<compile_context>
chip_gen: v7x
topology: tpu7x:2x2x1
jax: 0.10.0
libtpu: 0.0.40
codegen_flags: <defaults>
</compile_context>

<pallas_src>
import functools
import math

import jax
import jax.numpy as jnp
from jax.experimental import pallas as pl
from jax.experimental.pallas import tpu as pltpu

_MIB = 1024 * 1024


# ---------------------------------------------------------------------------
# VMEM budget + tiling helpers
# ---------------------------------------------------------------------------

@functools.lru_cache(maxsize=1)
def _vmem_budget_bytes() -> int:
    """~75% of physical per-core VMEM (96 MiB on v5e/v6e, 48 MiB on v7x),
    with a conservative fallback if the hardware query is unavailable."""
    cap = 64 * _MIB
    try:
        cap = int(pltpu.get_tpu_info().vmem_capacity_bytes)
    except Exception:
        pass
    return min((cap * 3) // 4, 100 * _MIB)


def _round_up(x: int, m: int) -> int:
    return ((x + m - 1) // m) * m


def _pick_tile(s: int, cap: int) -> int:
    """Largest tile <= cap dividing s; prefer multiples of 128 (lane-aligned),
    then multiples of 8 (sublane rule); a full-axis tile is always legal."""
    if s <= cap:
        return s
    t = (cap // 128) * 128
    while t >= 128:
        if s % t == 0:
            return t
        t -= 128
    t = (cap // 8) * 8
    while t >= 8:
        if s % t == 0:
            return t
        t -= 8
    # No aligned divisor <= cap: fall back to the full axis (always legal;
    # may exceed the soft budget for pathological sequence lengths).
    return s


# ---------------------------------------------------------------------------
# Kernel 1: tiled linear projection  y = (x @ W + b) * scale
# ---------------------------------------------------------------------------

def _linear_kernel(x_ref, w_ref, b_ref, o_ref, *, scale):
    # Native-dtype operands straight to the MXU, f32 accumulation.
    acc = jnp.dot(x_ref[...], w_ref[...], preferred_element_type=jnp.float32)
    acc = acc + b_ref[...].astype(jnp.float32)
    if scale != 1.0:
        acc = acc * scale          # folded 1/sqrt(Dk) for the Q projection
    o_ref[...] = acc.astype(o_ref.dtype)


def _linear_proj(x, w, b, *, scale=1.0):
    B, S, Din = x.shape
    Dout = w.shape[1]
    itemsize = jnp.dtype(x.dtype).itemsize
    budget = _vmem_budget_bytes()

    din_p = _round_up(Din, 128)
    dout_p = _round_up(Dout, 128)
    # Weights/bias are grid-constant; their (double-buffered, lane-padded)
    # footprint is fixed.
    fixed = 2 * Din * dout_p * jnp.dtype(w.dtype).itemsize + 2 * 8 * dout_p * 4

    tm_cap = 1024
    while True:
        tm = _pick_tile(S, tm_cap)
        fp = fixed + 2 * tm * (din_p + dout_p) * itemsize + tm * dout_p * 4
        if fp <= (budget * 3) // 4 or tm_cap <= 128:
            break
        tm_cap //= 2

    vmem_limit = budget if fp > 24 * _MIB else None
    grid = (B, S // tm)

    return pl.pallas_call(
        functools.partial(_linear_kernel, scale=scale),
        out_shape=jax.ShapeDtypeStruct((B, S, Dout), x.dtype),
        grid_spec=pltpu.PrefetchScalarGridSpec(
            num_scalar_prefetch=0,
            grid=grid,
            in_specs=[
                pl.BlockSpec((None, tm, Din), lambda bi, i: (bi, i, 0)),  # x
                pl.BlockSpec((Din, Dout), lambda bi, i: (0, 0)),          # W
                pl.BlockSpec((1, Dout), lambda bi, i: (0, 0)),            # b
            ],
            out_specs=pl.BlockSpec((None, tm, Dout), lambda bi, i: (bi, i, 0)),
        ),
        compiler_params=pltpu.CompilerParams(
            dimension_semantics=("parallel", "parallel"),
            vmem_limit_bytes=vmem_limit),
    )(x, w, b)


# ---------------------------------------------------------------------------
# Kernel 2: flash-style attention over projected Q/K/V
# ---------------------------------------------------------------------------

def _flash_kernel(q_ref, k_ref, v_ref, o_ref, m_sc, l_sc, acc_sc):
    j = pl.program_id(2)

    @pl.when(j == 0)
    def _init():
        m_sc[...] = jnp.full_like(m_sc, -jnp.inf)
        l_sc[...] = jnp.zeros_like(l_sc)
        acc_sc[...] = jnp.zeros_like(acc_sc)

    # scores = Q @ K^T without materializing a transpose: contract the last
    # dim of both operands on the MXU. 1/sqrt(Dk) already folded into Q.
    scores = jax.lax.dot_general(
        q_ref[...], k_ref[...],
        dimension_numbers=(((1,), (1,)), ((), ())),
        preferred_element_type=jnp.float32)

    # Online (flash) softmax update, all in f32 (no bf16 VPU/EUP on v5e).
    m_prev = m_sc[...]
    m_new = jnp.maximum(m_prev, jnp.max(scores, axis=-1, keepdims=True))
    alpha = jnp.exp(m_prev - m_new)
    p = jnp.exp(scores - m_new)
    l_sc[...] = alpha * l_sc[...] + jnp.sum(p, axis=-1, keepdims=True)
    # Cast p to the V dtype: native bf16 MXU path when inputs are bf16
    # (no-op for f32), f32 accumulation either way.
    acc_sc[...] = alpha * acc_sc[...] + jnp.dot(
        p.astype(v_ref.dtype), v_ref[...], preferred_element_type=jnp.float32)
    m_sc[...] = m_new

    @pl.when(j == pl.num_programs(2) - 1)
    def _finalize():
        inv_l = pl.reciprocal(l_sc[...], approx=True)   # EUP vrcp — ~free
        o_ref[...] = (acc_sc[...] * inv_l).astype(o_ref.dtype)


def _flash_attention(q, k, v):
    B, Sq, Dk = q.shape
    _, Sk, _ = k.shape
    Dv = v.shape[-1]
    itemsize = jnp.dtype(q.dtype).itemsize
    budget = _vmem_budget_bytes()

    dkp = _round_up(Dk, 128)
    dvp = _round_up(Dv, 128)

    # Prefer growing tq (Q-stationary: K/V streaming passes = Sq/tq); shrink tk
    # first when the budget is tight.
    tq_cap, tk_cap = 1024, 1024
    while True:
        tq = _pick_tile(Sq, tq_cap)
        tk = _pick_tile(Sk, tk_cap)
        tkp = _round_up(tk, 128)
        fp = (2 * tq * dkp * itemsize             # Q tile (double-buffered)
              + 2 * tk * (dkp + dvp) * itemsize   # K / V tiles
              + 2 * tq * dvp * itemsize           # output tile
              + tq * (2 * 128 + dvp) * 4          # m/l/acc f32 scratch
              + 3 * tq * tkp * 4)                 # scores temporaries
        if fp <= (budget * 3) // 4 or (tq_cap <= 128 and tk_cap <= 128):
            break
        if tk_cap > 256:
            tk_cap //= 2
        else:
            tq_cap //= 2

    vmem_limit = budget if fp > 24 * _MIB else None
    grid = (B, Sq // tq, Sk // tk)

    # TODO(synk): on v7x, verify the "parallel" axes shard across both
    # TensorCores; otherwise mark the batch axis pltpu.CORE_PARALLEL.
    return pl.pallas_call(
        _flash_kernel,
        out_shape=jax.ShapeDtypeStruct((B, Sq, Dv), q.dtype),
        grid_spec=pltpu.PrefetchScalarGridSpec(
            num_scalar_prefetch=0,
            grid=grid,
            in_specs=[
                pl.BlockSpec((None, tq, Dk), lambda b, i, j: (b, i, 0)),  # Q
                pl.BlockSpec((None, tk, Dk), lambda b, i, j: (b, j, 0)),  # K
                pl.BlockSpec((None, tk, Dv), lambda b, i, j: (b, j, 0)),  # V
            ],
            out_specs=pl.BlockSpec((None, tq, Dv), lambda b, i, j: (b, i, 0)),
            scratch_shapes=[
                pltpu.VMEM((tq, 1), jnp.float32),    # running max m
                pltpu.VMEM((tq, 1), jnp.float32),    # running sum l
                pltpu.VMEM((tq, Dv), jnp.float32),   # output accumulator
            ],
        ),
        compiler_params=pltpu.CompilerParams(
            dimension_semantics=("parallel", "parallel", "arbitrary"),
            vmem_limit_bytes=vmem_limit),
    )(q, k, v)


# ---------------------------------------------------------------------------
# Public entry point: AttentionHead.forward
# ---------------------------------------------------------------------------

@jax.jit
def attention_head(query, key, value, wq, bq, wk, bk, wv, bv):
    dk = wq.shape[1]
    scale = 1.0 / math.sqrt(dk)          # folded into the Q projection
    q_proj = _linear_proj(query, wq, bq, scale=scale)
    k_proj = _linear_proj(key, wk, bk)
    v_proj = _linear_proj(value, wv, bv)
    return _flash_attention(q_proj, k_proj, v_proj)


def reference(query, key, value, wq, bq, wk, bk, wv, bv):
    Q = query @ wq + bq
    K = key @ wk + bk
    V = value @ wv + bv
    scores = jnp.einsum("bqd,bkd->bqk", Q, K) / math.sqrt(Q.shape[-1])
    attn = jax.nn.softmax(scores, axis=-1)
    return jnp.einsum("bqk,bkv->bqv", attn, V)


if __name__ == "__main__":
    # Small shapes consistent with the module's forward.
    B, S, DIM_IN, DIM_K, DIM_V = 2, 8, 32, 16, 16

    key0 = jax.random.PRNGKey(0)
    keys = jax.random.split(key0, 9)

    query = jax.random.normal(keys[0], (B, S, DIM_IN), dtype=jnp.float32)
    key_in = jax.random.normal(keys[1], (B, S, DIM_IN), dtype=jnp.float32)
    value = jax.random.normal(keys[2], (B, S, DIM_IN), dtype=jnp.float32)

    # nn.Linear-style init: U(-1/sqrt(dim_in), 1/sqrt(dim_in)).
    bound = 1.0 / math.sqrt(DIM_IN)
    wq = jax.random.uniform(keys[3], (DIM_IN, DIM_K), minval=-bound, maxval=bound, dtype=jnp.float32)
    bq = jax.random.uniform(keys[4], (1, DIM_K), minval=-bound, maxval=bound, dtype=jnp.float32)
    wk = jax.random.uniform(keys[5], (DIM_IN, DIM_K), minval=-bound, maxval=bound, dtype=jnp.float32)
    bk = jax.random.uniform(keys[6], (1, DIM_K), minval=-bound, maxval=bound, dtype=jnp.float32)
    wv = jax.random.uniform(keys[7], (DIM_IN, DIM_V), minval=-bound, maxval=bound, dtype=jnp.float32)
    bv = jax.random.uniform(keys[8], (1, DIM_V), minval=-bound, maxval=bound, dtype=jnp.float32)

    out = attention_head(query, key_in, value, wq, bq, wk, bk, wv, bv)
    out = jax.block_until_ready(out)

    ref = reference(query, key_in, value, wq, bq, wk, bk, wv, bv)
    assert out.shape == (B, S, DIM_V)
    # approx reciprocal (EUP vrcp) => slightly relaxed tolerance vs exact divide.
    assert jnp.allclose(out, ref, atol=2e-3, rtol=2e-3), "mismatch vs reference"

    print("KERNEL_OK")
</pallas_src>

<mosaic_0001>
module attributes {stable_mosaic.version = 11 : i64} {
  func.func @_linear_kernel(%arg0: i32, %arg1: i32, %arg2: memref<1x8x32xf32, #tpu.memory_space<vmem>>, %arg3: memref<32x16xf32, #tpu.memory_space<vmem>>, %arg4: memref<1x16xf32, #tpu.memory_space<vmem>>, %arg5: memref<1x8x16xf32, #tpu.memory_space<vmem>>) attributes {dimension_semantics = [#tpu.dimension_semantics<parallel>, #tpu.dimension_semantics<parallel>], iteration_bounds = array<i64: 2, 1>, scalar_prefetch = 0 : i64, scratch_operands = 0 : i64, tpu.core_type = #tpu.core_type<tc>, window_params = [{transform_indices = @transform_0, window_bounds = array<i64: 1, 8, 32>}, {pipeline_mode = #tpu.pipeline_mode<synchronous>, transform_indices = @transform_1, window_bounds = array<i64: 32, 16>}, {pipeline_mode = #tpu.pipeline_mode<synchronous>, transform_indices = @transform_2, window_bounds = array<i64: 1, 16>}, {transform_indices = @transform_3, window_bounds = array<i64: 1, 8, 16>}]} {
    %c0 = arith.constant 0 : index
    %c0_0 = arith.constant 0 : index
    %c0_1 = arith.constant 0 : index
    %0 = vector.load %arg2[%c0, %c0_0, %c0_1] : memref<1x8x32xf32, #tpu.memory_space<vmem>>, vector<1x8x32xf32>
    %1 = vector.shape_cast %0 : vector<1x8x32xf32> to vector<8x32xf32>
    %c0_2 = arith.constant 0 : index
    %c0_3 = arith.constant 0 : index
    %2 = vector.load %arg3[%c0_2, %c0_3] : memref<32x16xf32, #tpu.memory_space<vmem>>, vector<32x16xf32>
    %cst = arith.constant dense<0.000000e+00> : vector<8x16xf32>
    %3 = tpu.matmul %1, %2, %cst {dimension_numbers = #tpu.dot_dimension_numbers<[1], [0], [0], [1], [0, 0, 1, 1], [], []>} : vector<8x32xf32>, vector<32x16xf32>, vector<8x16xf32> -> vector<8x16xf32>
    %c0_4 = arith.constant 0 : index
    %c0_5 = arith.constant 0 : index
    %4 = vector.load %arg4[%c0_4, %c0_5] : memref<1x16xf32, #tpu.memory_space<vmem>>, vector<1x16xf32>
    %5 = vector.broadcast %4 : vector<1x16xf32> to vector<8x16xf32>
    %6 = arith.addf %3, %5 : vector<8x16xf32>
    %cst_6 = arith.constant 2.500000e-01 : f32
    %7 = vector.broadcast %cst_6 : f32 to vector<8x16xf32>
    %8 = arith.mulf %6, %7 : vector<8x16xf32>
    %c0_7 = arith.constant 0 : index
    %c0_8 = arith.constant 0 : index
    %c0_9 = arith.constant 0 : index
    %9 = vector.load %arg5[%c0_7, %c0_8, %c0_9] : memref<1x8x16xf32, #tpu.memory_space<vmem>>, vector<1x8x16xf32>
    %10 = vector.shape_cast %9 : vector<1x8x16xf32> to vector<8x16xf32>
    %11 = vector.shape_cast %8 : vector<8x16xf32> to vector<1x8x16xf32>
    tpu.vector_store %arg5[%c0_7, %c0_8, %c0_9], %11 {strides = array<i32>} : memref<1x8x16xf32, #tpu.memory_space<vmem>>, vector<1x8x16xf32>,
    return
  }
  func.func @transform_0(%arg0: i32, %arg1: i32) -> (i32, i32, i32) {
    %c0_i32 = arith.constant 0 : i32
    %c0_i32_0 = arith.constant 0 : i32
    return %arg0, %arg1, %c0_i32 : i32, i32, i32
  }
  func.func @transform_1(%arg0: i32, %arg1: i32) -> (i32, i32) {
    %c0_i32 = arith.constant 0 : i32
    %c0_i32_0 = arith.constant 0 : i32
    %c0_i32_1 = arith.constant 0 : i32
    return %c0_i32, %c0_i32_0 : i32, i32
  }
  func.func @transform_2(%arg0: i32, %arg1: i32) -> (i32, i32) {
    %c0_i32 = arith.constant 0 : i32
    %c0_i32_0 = arith.constant 0 : i32
    %c0_i32_1 = arith.constant 0 : i32
    return %c0_i32, %c0_i32_0 : i32, i32
  }
  func.func @transform_3(%arg0: i32, %arg1: i32) -> (i32, i32, i32) {
    %c0_i32 = arith.constant 0 : i32
    %c0_i32_0 = arith.constant 0 : i32
    return %arg0, %arg1, %c0_i32 : i32, i32, i32
  }
}

module attributes {stable_mosaic.version = 11 : i64} {
  func.func @_linear_kernel(%arg0: i32, %arg1: i32, %arg2: memref<1x8x32xf32, #tpu.memory_space<vmem>>, %arg3: memref<32x16xf32, #tpu.memory_space<vmem>>, %arg4: memref<1x16xf32, #tpu.memory_space<vmem>>, %arg5: memref<1x8x16xf32, #tpu.memory_space<vmem>>) attributes {dimension_semantics = [#tpu.dimension_semantics<parallel>, #tpu.dimension_semantics<parallel>], iteration_bounds = array<i64: 2, 1>, scalar_prefetch = 0 : i64, scratch_operands = 0 : i64, tpu.core_type = #tpu.core_type<tc>, window_params = [{transform_indices = @transform_0, window_bounds = array<i64: 1, 8, 32>}, {pipeline_mode = #tpu.pipeline_mode<synchronous>, transform_indices = @transform_1, window_bounds = array<i64: 32, 16>}, {pipeline_mode = #tpu.pipeline_mode<synchronous>, transform_indices = @transform_2, window_bounds = array<i64: 1, 16>}, {transform_indices = @transform_3, window_bounds = array<i64: 1, 8, 16>}]} {
    %c0 = arith.constant 0 : index
    %c0_0 = arith.constant 0 : index
    %c0_1 = arith.constant 0 : index
    %0 = vector.load %arg2[%c0, %c0_0, %c0_1] : memref<1x8x32xf32, #tpu.memory_space<vmem>>, vector<1x8x32xf32>
    %1 = vector.shape_cast %0 : vector<1x8x32xf32> to vector<8x32xf32>
    %c0_2 = arith.constant 0 : index
    %c0_3 = arith.constant 0 : index
    %2 = vector.load %arg3[%c0_2, %c0_3] : memref<32x16xf32, #tpu.memory_space<vmem>>, vector<32x16xf32>
    %cst = arith.constant dense<0.000000e+00> : vector<8x16xf32>
    %3 = tpu.matmul %1, %2, %cst {dimension_numbers = #tpu.dot_dimension_numbers<[1], [0], [0], [1], [0, 0, 1, 1], [], []>} : vector<8x32xf32>, vector<32x16xf32>, vector<8x16xf32> -> vector<8x16xf32>
    %c0_4 = arith.constant 0 : index
    %c0_5 = arith.constant 0 : index
    %4 = vector.load %arg4[%c0_4, %c0_5] : memref<1x16xf32, #tpu.memory_space<vmem>>, vector<1x16xf32>
    %5 = vector.broadcast %4 : vector<1x16xf32> to vector<8x16xf32>
    %6 = arith.addf %3, %5 : vector<8x16xf32>
    %c0_6 = arith.constant 0 : index
    %c0_7 = arith.constant 0 : index
    %c0_8 = arith.constant 0 : index
    %7 = vector.load %arg5[%c0_6, %c0_7, %c0_8] : memref<1x8x16xf32, #tpu.memory_space<vmem>>, vector<1x8x16xf32>
    %8 = vector.shape_cast %7 : vector<1x8x16xf32> to vector<8x16xf32>
    %9 = vector.shape_cast %6 : vector<8x16xf32> to vector<1x8x16xf32>
    tpu.vector_store %arg5[%c0_6, %c0_7, %c0_8], %9 {strides = array<i32>} : memref<1x8x16xf32, #tpu.memory_space<vmem>>, vector<1x8x16xf32>,
    return
  }
  func.func @transform_0(%arg0: i32, %arg1: i32) -> (i32, i32, i32) {
    %c0_i32 = arith.constant 0 : i32
    %c0_i32_0 = arith.constant 0 : i32
    return %arg0, %arg1, %c0_i32 : i32, i32, i32
  }
  func.func @transform_1(%arg0: i32, %arg1: i32) -> (i32, i32) {
    %c0_i32 = arith.constant 0 : i32
    %c0_i32_0 = arith.constant 0 : i32
    %c0_i32_1 = arith.constant 0 : i32
    return %c0_i32, %c0_i32_0 : i32, i32
  }
  func.func @transform_2(%arg0: i32, %arg1: i32) -> (i32, i32) {
    %c0_i32 = arith.constant 0 : i32
    %c0_i32_0 = arith.constant 0 : i32
    %c0_i32_1 = arith.constant 0 : i32
    return %c0_i32, %c0_i32_0 : i32, i32
  }
  func.func @transform_3(%arg0: i32, %arg1: i32) -> (i32, i32, i32) {
    %c0_i32 = arith.constant 0 : i32
    %c0_i32_0 = arith.constant 0 : i32
    return %arg0, %arg1, %c0_i32 : i32, i32, i32
  }
}

module attributes {stable_mosaic.version = 11 : i64} {
  func.func @_flash_kernel(%arg0: i32, %arg1: i32, %arg2: i32, %arg3: memref<1x8x16xf32, #tpu.memory_space<vmem>>, %arg4: memref<1x8x16xf32, #tpu.memory_space<vmem>>, %arg5: memref<1x8x16xf32, #tpu.memory_space<vmem>>, %arg6: memref<1x8x16xf32, #tpu.memory_space<vmem>>, %arg7: memref<8x1xf32, #tpu.memory_space<vmem>>, %arg8: memref<8x1xf32, #tpu.memory_space<vmem>>, %arg9: memref<8x16xf32, #tpu.memory_space<vmem>>) attributes {dimension_semantics = [#tpu.dimension_semantics<parallel>, #tpu.dimension_semantics<parallel>, #tpu.dimension_semantics<arbitrary>], iteration_bounds = array<i64: 2, 1, 1>, scalar_prefetch = 0 : i64, scratch_operands = 3 : i64, tpu.core_type = #tpu.core_type<tc>, window_params = [{transform_indices = @transform_0, window_bounds = array<i64: 1, 8, 16>}, {transform_indices = @transform_1, window_bounds = array<i64: 1, 8, 16>}, {transform_indices = @transform_2, window_bounds = array<i64: 1, 8, 16>}, {transform_indices = @transform_3, window_bounds = array<i64: 1, 8, 16>}]} {
    %c0_i32 = arith.constant 0 : i32
    %0 = arith.cmpi eq, %arg2, %c0_i32 : i32
    %1 = arith.extui %0 : i1 to i32
    %c0_i32_0 = arith.constant 0 : i32
    %2 = arith.cmpi ne, %1, %c0_i32_0 : i32
    scf.if %2 {
      %cst_26 = arith.constant 0xFF800000 : f32
      %35 = vector.broadcast %cst_26 : f32 to vector<8x1xf32>
      %c0_27 = arith.constant 0 : index
      %c0_28 = arith.constant 0 : index
      %36 = vector.load %arg7[%c0_27, %c0_28] : memref<8x1xf32, #tpu.memory_space<vmem>>, vector<8x1xf32>
      tpu.vector_store %arg7[%c0_27, %c0_28], %35 {strides = array<i32>} : memref<8x1xf32, #tpu.memory_space<vmem>>, vector<8x1xf32>,
      %cst_29 = arith.constant 0.000000e+00 : f32
      %37 = vector.broadcast %cst_29 : f32 to vector<8x1xf32>
      %c0_30 = arith.constant 0 : index
      %c0_31 = arith.constant 0 : index
      %38 = vector.load %arg8[%c0_30, %c0_31] : memref<8x1xf32, #tpu.memory_space<vmem>>, vector<8x1xf32>
      tpu.vector_store %arg8[%c0_30, %c0_31], %37 {strides = array<i32>} : memref<8x1xf32, #tpu.memory_space<vmem>>, vector<8x1xf32>,
      %cst_32 = arith.constant 0.000000e+00 : f32
      %39 = vector.broadcast %cst_32 : f32 to vector<8x16xf32>
      %c0_33 = arith.constant 0 : index
      %c0_34 = arith.constant 0 : index
      %40 = vector.load %arg9[%c0_33, %c0_34] : memref<8x16xf32, #tpu.memory_space<vmem>>, vector<8x16xf32>
      tpu.vector_store %arg9[%c0_33, %c0_34], %39 {strides = array<i32>} : memref<8x16xf32, #tpu.memory_space<vmem>>, vector<8x16xf32>,
    } else {
    }
    %c0 = arith.constant 0 : index
    %c0_1 = arith.constant 0 : index
    %c0_2 = arith.constant 0 : index
    %3 = vector.load %arg3[%c0, %c0_1, %c0_2] : memref<1x8x16xf32, #tpu.memory_space<vmem>>, vector<1x8x16xf32>
    %4 = vector.shape_cast %3 : vector<1x8x16xf32> to vector<8x16xf32>
    %c0_3 = arith.constant 0 : index
    %c0_4 = arith.constant 0 : index
    %c0_5 = arith.constant 0 : index
    %5 = vector.load %arg4[%c0_3, %c0_4, %c0_5] : memref<1x8x16xf32, #tpu.memory_space<vmem>>, vector<1x8x16xf32>
    %6 = vector.shape_cast %5 : vector<1x8x16xf32> to vector<8x16xf32>
    %cst = arith.constant dense<0.000000e+00> : vector<8x8xf32>
    %7 = tpu.matmul %4, %6, %cst {dimension_numbers = #tpu.dot_dimension_numbers<[1], [1], [0], [0], [0, 0, 1, 0], [], []>} : vector<8x16xf32>, vector<8x16xf32>, vector<8x8xf32> -> vector<8x8xf32>
    %c0_6 = arith.constant 0 : index
    %c0_7 = arith.constant 0 : index
    %8 = vector.load %arg7[%c0_6, %c0_7] : memref<8x1xf32, #tpu.memory_space<vmem>>, vector<8x1xf32>
    %cst_8 = arith.constant dense<0xFF800000> : vector<8xf32>
    %9 = vector.multi_reduction <maximumf>, %7, %cst_8 [1] : vector<8x8xf32> to vector<8xf32>
    %10 = vector.shape_cast %9 : vector<8xf32> to vector<8x1xf32>
    %11 = arith.maximumf %8, %10 : vector<8x1xf32>
    %12 = arith.subf %8, %11 : vector<8x1xf32>
    %13 = math.exp %12 : vector<8x1xf32>
    %14 = vector.broadcast %11 : vector<8x1xf32> to vector<8x8xf32>
    %15 = arith.subf %7, %14 : vector<8x8xf32>
    %16 = math.exp %15 : vector<8x8xf32>
    %c0_9 = arith.constant 0 : index
    %c0_10 = arith.constant 0 : index
    %17 = vector.load %arg8[%c0_9, %c0_10] : memref<8x1xf32, #tpu.memory_space<vmem>>, vector<8x1xf32>
    %18 = arith.mulf %13, %17 : vector<8x1xf32>
    %cst_11 = arith.constant dense<0.000000e+00> : vector<8xf32>
    %19 = vector.multi_reduction <add>, %16, %cst_11 [1] : vector<8x8xf32> to vector<8xf32>
    %20 = vector.shape_cast %19 : vector<8xf32> to vector<8x1xf32>
    %21 = arith.addf %18, %20 : vector<8x1xf32>
    %c0_12 = arith.constant 0 : index
    %c0_13 = arith.constant 0 : index
    %22 = vector.load %arg8[%c0_12, %c0_13] : memref<8x1xf32, #tpu.memory_space<vmem>>, vector<8x1xf32>
    tpu.vector_store %arg8[%c0_12, %c0_13], %21 {strides = array<i32>} : memref<8x1xf32, #tpu.memory_space<vmem>>, vector<8x1xf32>,
    %c0_14 = arith.constant 0 : index
    %c0_15 = arith.constant 0 : index
    %23 = vector.load %arg9[%c0_14, %c0_15] : memref<8x16xf32, #tpu.memory_space<vmem>>, vector<8x16xf32>
    %24 = vector.broadcast %13 : vector<8x1xf32> to vector<8x16xf32>
    %25 = arith.mulf %24, %23 : vector<8x16xf32>
    %c0_16 = arith.constant 0 : index
    %c0_17 = arith.constant 0 : index
    %c0_18 = arith.constant 0 : index
    %26 = vector.load %arg5[%c0_16, %c0_17, %c0_18] : memref<1x8x16xf32, #tpu.memory_space<vmem>>, vector<1x8x16xf32>
    %27 = vector.shape_cast %26 : vector<1x8x16xf32> to vector<8x16xf32>
    %cst_19 = arith.constant dense<0.000000e+00> : vector<8x16xf32>
    %28 = tpu.matmul %16, %27, %cst_19 {dimension_numbers = #tpu.dot_dimension_numbers<[1], [0], [0], [1], [0, 0, 1, 1], [], []>} : vector<8x8xf32>, vector<8x16xf32>, vector<8x16xf32> -> vector<8x16xf32>
    %29 = arith.addf %25, %28 : vector<8x16xf32>
    %c0_20 = arith.constant 0 : index
    %c0_21 = arith.constant 0 : index
    %30 = vector.load %arg9[%c0_20, %c0_21] : memref<8x16xf32, #tpu.memory_space<vmem>>, vector<8x16xf32>
    tpu.vector_store %arg9[%c0_20, %c0_21], %29 {strides = array<i32>} : memref<8x16xf32, #tpu.memory_space<vmem>>, vector<8x16xf32>,
    %c0_22 = arith.constant 0 : index
    %c0_23 = arith.constant 0 : index
    %31 = vector.load %arg7[%c0_22, %c0_23] : memref<8x1xf32, #tpu.memory_space<vmem>>, vector<8x1xf32>
    tpu.vector_store %arg7[%c0_22, %c0_23], %11 {strides = array<i32>} : memref<8x1xf32, #tpu.memory_space<vmem>>, vector<8x1xf32>,
    %c0_i32_24 = arith.constant 0 : i32
    %32 = arith.cmpi eq, %arg2, %c0_i32_24 : i32
    %33 = arith.extui %32 : i1 to i32
    %c0_i32_25 = arith.constant 0 : i32
    %34 = arith.cmpi ne, %33, %c0_i32_25 : i32
    scf.if %34 {
      %c0_26 = arith.constant 0 : index
      %c0_27 = arith.constant 0 : index
      %35 = vector.load %arg8[%c0_26, %c0_27] : memref<8x1xf32, #tpu.memory_space<vmem>>, vector<8x1xf32>
      %36 = tpu.reciprocal %35 {approx = true} : vector<8x1xf32> -> vector<8x1xf32>
      %c0_28 = arith.constant 0 : index
      %c0_29 = arith.constant 0 : index
      %37 = vector.load %arg9[%c0_28, %c0_29] : memref<8x16xf32, #tpu.memory_space<vmem>>, vector<8x16xf32>
      %38 = vector.broadcast %36 : vector<8x1xf32> to vector<8x16xf32>
      %39 = arith.mulf %37, %38 : vector<8x16xf32>
      %c0_30 = arith.constant 0 : index
      %c0_31 = arith.constant 0 : index
      %c0_32 = arith.constant 0 : index
      %40 = vector.load %arg6[%c0_30, %c0_31, %c0_32] : memref<1x8x16xf32, #tpu.memory_space<vmem>>, vector<1x8x16xf32>
      %41 = vector.shape_cast %40 : vector<1x8x16xf32> to vector<8x16xf32>
      %42 = vector.shape_cast %39 : vector<8x16xf32> to vector<1x8x16xf32>
      tpu.vector_store %arg6[%c0_30, %c0_31, %c0_32], %42 {strides = array<i32>} : memref<1x8x16xf32, #tpu.memory_space<vmem>>, vector<1x8x16xf32>,
    } else {
    }
    return
  }
  func.func @transform_0(%arg0: i32, %arg1: i32, %arg2: i32) -> (i32, i32, i32) {
    %c0_i32 = arith.constant 0 : i32
    %c0_i32_0 = arith.constant 0 : i32
    return %arg0, %arg1, %c0_i32 : i32, i32, i32
  }
  func.func @transform_1(%arg0: i32, %arg1: i32, %arg2: i32) -> (i32, i32, i32) {
    %c0_i32 = arith.constant 0 : i32
    %c0_i32_0 = arith.constant 0 : i32
    return %arg0, %arg2, %c0_i32 : i32, i32, i32
  }
  func.func @transform_2(%arg0: i32, %arg1: i32, %arg2: i32) -> (i32, i32, i32) {
    %c0_i32 = arith.constant 0 : i32
    %c0_i32_0 = arith.constant 0 : i32
    return %arg0, %arg2, %c0_i32 : i32, i32, i32
  }
  func.func @transform_3(%arg0: i32, %arg1: i32, %arg2: i32) -> (i32, i32, i32) {
    %c0_i32 = arith.constant 0 : i32
    %c0_i32_0 = arith.constant 0 : i32
    return %arg0, %arg1, %c0_i32 : i32, i32, i32
  }
}

</mosaic_0001>

<llo_original>
// kernel: attention_head.4
$region0: #{attention_head.4}
  #allocation0 [shape = 'u32[]', space=smem, size = 0x4, offset = 0x4, fixed_abs, tag = 'smem constant byte address 0x4 - core index']
  #allocation1 [shape = 'u32[144,128]{1,0:T(1,128)}', space=vmem, size = 0x12000, scoped, tag = 'internal scratch']
  %s0 = inlined_call_operand.vmem [shape: f32[2,8,32], index: 0, kind: input, shape index: {}]
  %s1 = inlined_call_operand.vmem [shape: f32[32,16], index: 1, kind: input, shape index: {}]
  %s2 = inlined_call_operand.vmem [shape: f32[1,16], index: 2, kind: input, shape index: {}]
  %s3 = inlined_call_operand.vmem [shape: f32[2,8,16], index: 3, kind: output, shape index: {}]
  %s4 = sld [smem:[#allocation0]]
  $region45: #{attention_head.4} parent=0
    _
  %s6 = ssub.s32 1, %s4
  %s7 = scalar_select 0, %s6, %s4
  loop: start=0, step=1, limit=4
  $region2: #{attention_head.4} parent=0 // loop_pre_header
    _
  $region3: #{attention_head.4} parent=0 // loop_header
    %s9 = sphi 0, %s13
    %p10 = scmp.ge.s32.totalorder %s9, 4
    %s16 = sphi 0, %s28
    %s17 = sphi 0, %s24
    %s18 = sphi 0, %s16
    %s19 = sphi 0, %s17
    %s20 = sphi 0, %s18
    %s21 = sphi 0, %s19
    %s33 = sphi 0, %s35
    %s36 = sphi 0, %s33
    %s37 = sphi 0, %s36
    %s53 = sphi 0, %s37
    %s57 = sphi 0, %s57
    %s59 = sphi 0, %s57
    %s60 = sphi 0, %s59
    %s74 = sphi 0, %s60
    %s78 = sphi 0, %s78
    %s80 = sphi 0, %s78
    %s81 = sphi 0, %s80
    %s95 = sphi 0, %s81
    %s103 = sphi 0, %s105
    %s106 = sphi 0, %s103
    %s107 = sphi 0, %s106
    %s123 = sphi 0, %s107
  $region4: #{attention_head.4} parent=0 // loop_header_branch
    %12 = sbr.rel (%p10) target = $region8
  $region5: #{attention_head.4} parent=0 // loop_body
    %s14 = ssub.s32 %s9, 1
    %s15 = ssub.s32 %s9, 2
    %s22 = sadd.s32 1, %s17
    %p23 = scmp.ge.s32.totalorder %s22, 1
    %s24 = scalar_select %p23, 0, %s22
    %s25 = sadd.s32 1, %s16
    %s26 = scalar_select %p23, %s25, %s16
    %p27 = scmp.ge.s32.totalorder %s26, 2
    %s28 = scalar_select %p27, 0, %s26
    %s29 = ssub.s32 %s16, %s28
    %s30 = ssub.s32 %s17, %s24
    %s31 = sor.u32 %s29, %s30
    %p32 = scmp.eq.s32.totalorder %s31, 0
    %s34 = sadd.s32 %s33, 1
    %s35 = scalar_select %p32, %s33, %s34
    %p38 = pneg %p32
    %p39 = scmp.eq.s32.totalorder %s9, 1
    %p40 = por %p38, %p39
    %p41 = scmp.ne.s32.totalorder %s33, %s36
    %p42 = scmp.eq.s32.totalorder %s9, 0
    %p43 = por %p41, %p42
    %p44 = scmp.ne.s32.totalorder %s33, %s36
    %p45 = scmp.eq.s32.totalorder %s14, 1
    %p46 = por %p44, %p45
    %p47 = scmp.ne.s32.totalorder %s36, %s37
    %p48 = scmp.eq.s32.totalorder %s14, 0
    %p49 = por %p47, %p48
    %p50 = scmp.ne.s32.totalorder %s36, %s37
    %p51 = scmp.eq.s32.totalorder %s15, 1
    %p52 = por %p50, %p51
    %p54 = scmp.ne.s32.totalorder %s37, %s53
    %p55 = scmp.eq.s32.totalorder %s15, 0
    %p56 = por %p54, %p55
    %s58 = sadd.s32 %s57, 1
    %p61 = scmp.eq.s32.totalorder %s9, 1
    %p62 = scmp.ne.s32.totalorder %s57, %s59
    %p63 = scmp.eq.s32.totalorder %s9, 0
    %p64 = por %p62, %p63
    %p65 = scmp.ne.s32.totalorder %s57, %s59
    %p66 = scmp.eq.s32.totalorder %s14, 1
    %p67 = por %p65, %p66
    %p68 = scmp.ne.s32.totalorder %s59, %s60
    %p69 = scmp.eq.s32.totalorder %s14, 0
    %p70 = por %p68, %p69
    %p71 = scmp.ne.s32.totalorder %s59, %s60
    %p72 = scmp.eq.s32.totalorder %s15, 1
    %p73 = por %p71, %p72
    %p75 = scmp.ne.s32.totalorder %s60, %s74
    %p76 = scmp.eq.s32.totalorder %s15, 0
    %p77 = por %p75, %p76
    %s79 = sadd.s32 %s78, 1
    %p82 = scmp.eq.s32.totalorder %s9, 1
    %p83 = scmp.ne.s32.totalorder %s78, %s80
    %p84 = scmp.eq.s32.totalorder %s9, 0
    %p85 = por %p83, %p84
    %p86 = scmp.ne.s32.totalorder %s78, %s80
    %p87 = scmp.eq.s32.totalorder %s14, 1
    %p88 = por %p86, %p87
    %p89 = scmp.ne.s32.totalorder %s80, %s81
    %p90 = scmp.eq.s32.totalorder %s14, 0
    %p91 = por %p89, %p90
    %p92 = scmp.ne.s32.totalorder %s80, %s81
    %p93 = scmp.eq.s32.totalorder %s15, 1
    %p94 = por %p92, %p93
    %p96 = scmp.ne.s32.totalorder %s81, %s95
    %p97 = scmp.eq.s32.totalorder %s15, 0
    %p98 = por %p96, %p97
    %s99 = ssub.s32 %s16, %s28
    %s100 = ssub.s32 %s17, %s24
    %s101 = sor.u32 %s99, %s100
    %p102 = scmp.eq.s32.totalorder %s101, 0
    %s104 = sadd.s32 %s103, 1
    %s105 = scalar_select %p102, %s103, %s104
    %p108 = pneg %p102
    %p109 = scmp.eq.s32.totalorder %s9, 1
    %p110 = por %p108, %p109
    %p111 = scmp.ne.s32.totalorder %s103, %s106
    %p112 = scmp.eq.s32.totalorder %s9, 0
    %p113 = por %p111, %p112
    %p114 = scmp.ne.s32.totalorder %s103, %s106
    %p115 = scmp.eq.s32.totalorder %s14, 1
    %p116 = por %p114, %p115
    %p117 = scmp.ne.s32.totalorder %s106, %s107
    %p118 = scmp.eq.s32.totalorder %s14, 0
    %p119 = por %p117, %p118
    %p120 = scmp.ne.s32.totalorder %s106, %s107
    %p121 = scmp.eq.s32.totalorder %s15, 1
    %p122 = por %p120, %p121
    %p124 = scmp.ne.s32.totalorder %s107, %s123
    %p125 = scmp.eq.s32.totalorder %s15, 0
    %p126 = por %p124, %p125
    %p127 = scmp.le.s32.totalorder 1, %s9
    %p128 = scmp.lt.s32.totalorder %s9, 3
    %p129 = pnand %p127, %p128
    %p130 = pneg %p129
    // Predicated region
    $region9: #{attention_head.4} parent=5 // pred_check
      _
    $region10: #{attention_head.4} parent=5 // pred_check_branch
      %132 = sbr.rel (%p129) target = $region12
    $region11: #{attention_head.4} parent=5 // pred_region
      %s133 = ssub.s32 %s9, 1
      // Predicated region
      $region13: #{attention_head.4} parent=11 // pred_check
        %p134 = pneg %p70
      $region14: #{attention_head.4} parent=11 // pred_check_branch
        %136 = sbr.rel (%p134) target = $region16
      $region15: #{attention_head.4} parent=11 // pred_region
        _
      $region16: #{attention_head.4} parent=11 // pred_fallthru
        _
      // Predicated region
      $region17: #{attention_head.4} parent=11 // pred_check
        %p137 = pneg %p91
      $region18: #{attention_head.4} parent=11 // pred_check_branch
        %139 = sbr.rel (%p137) target = $region20
      $region19: #{attention_head.4} parent=11 // pred_region
        _
      $region20: #{attention_head.4} parent=11 // pred_fallthru
        _
    $region12: #{attention_head.4} parent=5 // pred_fallthru
      _
    %p140 = scmp.lt.s32.totalorder %s9, 2
    // Predicated region
    $region21: #{attention_head.4} parent=5 // pred_check
      %p141 = pneg %p140
    $region22: #{attention_head.4} parent=5 // pred_check_branch
      %143 = sbr.rel (%p141) target = $region24
    $region23: #{attention_head.4} parent=5 // pred_region
      // Predicated region
      $region25: #{attention_head.4} parent=23 // pred_check
        %p144 = pneg %p43
      $region26: #{attention_head.4} parent=23 // pred_check_branch
        %146 = sbr.rel (%p144) target = $region28
      $region27: #{attention_head.4} parent=23 // pred_region
        %p147 = scmp.lt.s32.totalorder %s16, 1
        %s148 = scalar_select %p147, %s16, 1
        %p149 = scmp.lt.s32.totalorder %s17, 0
        %s150 = scalar_select %p149, %s17, 0
        %s151 = sadd.s32 %s150, %s148
        %s152 = smul.addr %s151, 8
        %s153 = scalar_lea.vmem %s0, %s152
      $region28: #{attention_head.4} parent=23 // pred_fallthru
        _
    $region24: #{attention_head.4} parent=5 // pred_fallthru
      _
    %p154 = scmp.le.s32.totalorder 1, %s9
    %p155 = scmp.lt.s32.totalorder %s9, 3
    %p156 = pnand %p154, %p155
    %p157 = pneg %p156
    // Predicated region
    $region29: #{attention_head.4} parent=5 // pred_check
      _
    $region30: #{attention_head.4} parent=5 // pred_check_branch
      %159 = sbr.rel (%p156) target = $region32
    $region31: #{attention_head.4} parent=5 // pred_region
      %s160 = ssub.s32 %s9, 1
      %p161 = scmp.lt.s32.totalorder %s18, 1
      %s162 = scalar_select %p161, %s18, 1
      %p163 = scmp.lt.s32.totalorder %s19, 0
      %s164 = scalar_select %p163, %s19, 0
      %s165 = sadd.s32 %s164, %s162
      %s166 = smul.addr %s165, 8
      %s167 = scalar_lea.vmem %s0, %s166
      %p168 = pneg %p49
      %p169 = pneg %p46
      %p170 = pneg %p70
      %p171 = pneg %p67
      %p172 = pneg %p91
      %p173 = pneg %p88
      %p174 = pneg %p119
      %p175 = pneg %p116
      %p176 = scmp.lt.s32.totalorder %s18, 1
      %s177 = scalar_select %p176, %s18, 1
      %p178 = scmp.lt.s32.totalorder %s19, 0
      %s179 = scalar_select %p178, %s19, 0
      %s180 = sadd.s32 %s179, %s177
      %s181 = smul.addr %s180, 8
      %s182 = scalar_lea.vmem %s3, %s181
      %p183 = scmp.lt.s32.totalorder %s18, 1
      %s184 = scalar_select %p183, %s18, 1
      %p185 = scmp.lt.s32.totalorder %s19, 0
      %s186 = scalar_select %p185, %s19, 0
      %s187 = sadd.s32 %s186, %s184
      %s188 = smul.addr %s187, 8
      %s189 = scalar_lea.vmem %s0, %s188
      %p190 = scmp.lt.s32.totalorder %s18, 1
      %s191 = scalar_select %p190, %s18, 1
      %p192 = scmp.lt.s32.totalorder %s19, 0
      %s193 = scalar_select %p192, %s19, 0
      %s194 = sadd.s32 %s193, %s191
      %s195 = smul.addr %s194, 8
      %s196 = scalar_lea.vmem %s3, %s195
      %v197 = vld [vmem:[%s189] sm:$0xff]
      %v198 = vld [vmem:[%s1] sm:$0xff]
      %v199 = vld [vmem:[%s1 + $0x8] sm:$0xff]
      %v200 = vld [vmem:[%s1 + $0x10] sm:$0xff]
      %v201 = vld [vmem:[%s1 + $0x18] sm:$0xff]
      %v202 = vld [vmem:[%s2] sm:$0x1]
      %v204 = vlaneseq
      %v205 = vshrl.u32 %v204, 7
      %v206 = vsub.s32 0, %v205
      %v207 = vrot.slane %v202, %v206
      %vm209 = vcmask 261120
      %v211 = vsel %vm209, %v197, 0
      %213 = vmatprep.subr.mxu0 0.0
      %214 = vmatpush1.msra.mxu0 %v198
      %215 = vmatprep.subr.mxu0 0.0
      %216 = vmatpush1.msra.mxu0 %v199
      %217 = vmatprep.subr.mxu0 0.0
      %218 = vmatpush1.msra.mxu0 %v200
      %219 = vmatprep.subr.mxu0 0.0
      %220 = vmatpush1.msra.mxu0 %v201
      %221 = vmatprep.subr.mxu0 0.0
      %222 = vmatpush1.msra.mxu0 0.0
      %223 = vmatprep.subr.mxu0 0.0
      %224 = vmatpush1.msra.mxu0 0.0
      %225 = vmatprep.subr.mxu0 0.0
      %226 = vmatpush1.msra.mxu0 0.0
      %227 = vmatprep.subr.mxu0 0.0
      %228 = vmatpush1.msra.mxu0 0.0
      %229 = vmatprep.subr.mxu0 0.0
      %230 = vmatpush1.msra.mxu0 0.0
      %231 = vmatprep.subr.mxu0 0.0
      %232 = vmatpush1.msra.mxu0 0.0
      %233 = vmatprep.subr.mxu0 0.0
      %234 = vmatpush1.msra.mxu0 0.0
      %235 = vmatprep.subr.mxu0 0.0
      %236 = vmatpush1.msra.mxu0 0.0
      %237 = vmatprep.subr.mxu0 0.0
      %238 = vmatpush1.msra.mxu0 0.0
      %239 = vmatprep.subr.mxu0 0.0
      %240 = vmatpush1.msra.mxu0 0.0
      %241 = vmatprep.subr.mxu0 0.0
      %242 = vmatpush1.msra.mxu0 0.0
      %243 = vmatprep.subr.mxu0 0.0
      %244 = vmatpush1.msra.mxu0 0.0
      %245 = vmatprep.subr.mxu0 0.0
      %246 = vmatpush1.msra.mxu0 0.0
      %247 = vmatprep.subr.mxu0 0.0
      %248 = vmatpush1.msra.mxu0 0.0
      %249 = vmatprep.subr.mxu0 0.0
      %250 = vmatpush1.msra.mxu0 0.0
      %251 = vmatprep.subr.mxu0 0.0
      %252 = vmatpush1.msra.mxu0 0.0
      %253 = vmatprep.subr.mxu0 0.0
      %254 = vmatpush1.msra.mxu0 0.0
      %255 = vmatprep.subr.mxu0 0.0
      %256 = vmatpush1.msra.mxu0 0.0
      %257 = vmatprep.subr.mxu0 0.0
      %258 = vmatpush1.msra.mxu0 0.0
      %259 = vmatprep.subr.mxu0 0.0
      %260 = vmatpush1.msra.mxu0 0.0
      %261 = vmatprep.subr.mxu0 0.0
      %262 = vmatpush1.msra.mxu0 0.0
      %263 = vmatprep.subr.mxu0 0.0
      %264 = vmatpush1.msra.mxu0 0.0
      %265 = vmatprep.subr.mxu0 0.0
      %266 = vmatpush1.msra.mxu0 0.0
      %267 = vmatprep.subr.mxu0 0.0
      %268 = vmatpush1.msra.mxu0 0.0
      %269 = vmatprep.subr.mxu0 0.0
      %270 = vmatpush1.msra.mxu0 0.0
      %271 = vmatprep.subr.mxu0 0.0
      %272 = vmatpush1.msra.mxu0 0.0
      %273 = vmatprep.subr.mxu0 0.0
      %274 = vmatpush1.msra.mxu0 0.0
      %275 = vmatprep.subr.mxu0 0.0
      %276 = vmatpush1.msra.mxu0 0.0
      %277 = vmatprep.mubr.f32.mxu0 0.0
      %278 = vmatmul.mubr.f32.gmra.mrb[0].mxu0 %v211
      %v279 = vpop.f32.mrb[0].mxu0
      %v280 = vadd.f32 %v207, %v279
      %v281 = vpop.f32.mrb[0].mxu0
      %282 = vdwg.mxu0
      %v283 = vmul.f32 %v280, 0.25
      %vm284 = vcmask 130048
      %285 = vst.msk [vmem:[%s196] sm:$0xff] %vm284, %v283
      %p286 = scmp.lt.s32.totalorder %s18, 1
      %s287 = scalar_select %p286, %s18, 1
      %p288 = scmp.lt.s32.totalorder %s19, 0
      %s289 = scalar_select %p288, %s19, 0
      %s290 = sadd.s32 %s289, %s287
      %s291 = smul.addr %s290, 8
      %s292 = scalar_lea.vmem %s3, %s291
      // Predicated region
      $region33: #{attention_head.4} parent=31 // pred_check
        %p293 = pneg %p116
      $region34: #{attention_head.4} parent=31 // pred_check_branch
        %295 = sbr.rel (%p293) target = $region36
      $region35: #{attention_head.4} parent=31 // pred_region
        _
      $region36: #{attention_head.4} parent=31 // pred_fallthru
        _
    $region32: #{attention_head.4} parent=5 // pred_fallthru
      _
    %p296 = scmp.le.s32.totalorder 2, %s9
    // Predicated region
    $region37: #{attention_head.4} parent=5 // pred_check
      %p297 = pneg %p296
    $region38: #{attention_head.4} parent=5 // pred_check_branch
      %299 = sbr.rel (%p297) target = $region40
    $region39: #{attention_head.4} parent=5 // pred_region
      %s300 = ssub.s32 %s9, 2
      // Predicated region
      $region41: #{attention_head.4} parent=39 // pred_check
        %p301 = pneg %p122
      $region42: #{attention_head.4} parent=39 // pred_check_branch
        %303 = sbr.rel (%p301) target = $region44
      $region43: #{attention_head.4} parent=39 // pred_region
        %p304 = scmp.lt.s32.totalorder %s20, 1
        %s305 = scalar_select %p304, %s20, 1
        %p306 = scmp.lt.s32.totalorder %s21, 0
        %s307 = scalar_select %p306, %s21, 0
        %s308 = sadd.s32 %s307, %s305
        %s309 = smul.addr %s308, 8
        %s310 = scalar_lea.vmem %s3, %s309
      $region44: #{attention_head.4} parent=39 // pred_fallthru
        _
    $region40: #{attention_head.4} parent=5 // pred_fallthru
      _
  $region6: #{attention_head.4} parent=0 // loop_footer
    %s13 = sadd.s32 1, %s9
  $region7: #{attention_head.4} parent=0 // loop_footer_branch
    %8 = sbr.rel target = $region3
  $region8: #{attention_head.4} parent=0 // loop_exit
    _

// kernel: attention_head.5
$region0: #{attention_head.5}
  #allocation0 [shape = 'u32[]', space=smem, size = 0x4, offset = 0x4, fixed_abs, tag = 'smem constant byte address 0x4 - core index']
  #allocation1 [shape = 'u32[144,128]{1,0:T(1,128)}', space=vmem, size = 0x12000, scoped, tag = 'internal scratch']
  %s0 = inlined_call_operand.vmem [shape: f32[2,8,32], index: 0, kind: input, shape index: {}]
  %s1 = inlined_call_operand.vmem [shape: f32[32,16], index: 1, kind: input, shape index: {}]
  %s2 = inlined_call_operand.vmem [shape: f32[1,16], index: 2, kind: input, shape index: {}]
  %s3 = inlined_call_operand.vmem [shape: f32[2,8,16], index: 3, kind: output, shape index: {}]
  %s4 = sld [smem:[#allocation0]]
  $region45: #{attention_head.5} parent=0
    _
  %s6 = ssub.s32 1, %s4
  %s7 = scalar_select 0, %s6, %s4
  loop: start=0, step=1, limit=4
  $region2: #{attention_head.5} parent=0 // loop_pre_header
    _
  $region3: #{attention_head.5} parent=0 // loop_header
    %s9 = sphi 0, %s13
    %p10 = scmp.ge.s32.totalorder %s9, 4
    %s16 = sphi 0, %s28
    %s17 = sphi 0, %s24
    %s18 = sphi 0, %s16
    %s19 = sphi 0, %s17
    %s20 = sphi 0, %s18
    %s21 = sphi 0, %s19
    %s33 = sphi 0, %s35
    %s36 = sphi 0, %s33
    %s37 = sphi 0, %s36
    %s53 = sphi 0, %s37
    %s57 = sphi 0, %s57
    %s59 = sphi 0, %s57
    %s60 = sphi 0, %s59
    %s74 = sphi 0, %s60
    %s78 = sphi 0, %s78
    %s80 = sphi 0, %s78
    %s81 = sphi 0, %s80
    %s95 = sphi 0, %s81
    %s103 = sphi 0, %s105
    %s106 = sphi 0, %s103
    %s107 = sphi 0, %s106
    %s123 = sphi 0, %s107
  $region4: #{attention_head.5} parent=0 // loop_header_branch
    %12 = sbr.rel (%p10) target = $region8
  $region5: #{attention_head.5} parent=0 // loop_body
    %s14 = ssub.s32 %s9, 1
    %s15 = ssub.s32 %s9, 2
    %s22 = sadd.s32 1, %s17
    %p23 = scmp.ge.s32.totalorder %s22, 1
    %s24 = scalar_select %p23, 0, %s22
    %s25 = sadd.s32 1, %s16
    %s26 = scalar_select %p23, %s25, %s16
    %p27 = scmp.ge.s32.totalorder %s26, 2
    %s28 = scalar_select %p27, 0, %s26
    %s29 = ssub.s32 %s16, %s28
    %s30 = ssub.s32 %s17, %s24
    %s31 = sor.u32 %s29, %s30
    %p32 = scmp.eq.s32.totalorder %s31, 0
    %s34 = sadd.s32 %s33, 1
    %s35 = scalar_select %p32, %s33, %s34
    %p38 = pneg %p32
    %p39 = scmp.eq.s32.totalorder %s9, 1
    %p40 = por %p38, %p39
    %p41 = scmp.ne.s32.totalorder %s33, %s36
    %p42 = scmp.eq.s32.totalorder %s9, 0
    %p43 = por %p41, %p42
    %p44 = scmp.ne.s32.totalorder %s33, %s36
    %p45 = scmp.eq.s32.totalorder %s14, 1
    %p46 = por %p44, %p45
    %p47 = scmp.ne.s32.totalorder %s36, %s37
    %p48 = scmp.eq.s32.totalorder %s14, 0
    %p49 = por %p47, %p48
    %p50 = scmp.ne.s32.totalorder %s36, %s37
    %p51 = scmp.eq.s32.totalorder %s15, 1
    %p52 = por %p50, %p51
    %p54 = scmp.ne.s32.totalorder %s37, %s53
    %p55 = scmp.eq.s32.totalorder %s15, 0
    %p56 = por %p54, %p55
    %s58 = sadd.s32 %s57, 1
    %p61 = scmp.eq.s32.totalorder %s9, 1
    %p62 = scmp.ne.s32.totalorder %s57, %s59
    %p63 = scmp.eq.s32.totalorder %s9, 0
    %p64 = por %p62, %p63
    %p65 = scmp.ne.s32.totalorder %s57, %s59
    %p66 = scmp.eq.s32.totalorder %s14, 1
    %p67 = por %p65, %p66
    %p68 = scmp.ne.s32.totalorder %s59, %s60
    %p69 = scmp.eq.s32.totalorder %s14, 0
    %p70 = por %p68, %p69
    %p71 = scmp.ne.s32.totalorder %s59, %s60
    %p72 = scmp.eq.s32.totalorder %s15, 1
    %p73 = por %p71, %p72
    %p75 = scmp.ne.s32.totalorder %s60, %s74
    %p76 = scmp.eq.s32.totalorder %s15, 0
    %p77 = por %p75, %p76
    %s79 = sadd.s32 %s78, 1
    %p82 = scmp.eq.s32.totalorder %s9, 1
    %p83 = scmp.ne.s32.totalorder %s78, %s80
    %p84 = scmp.eq.s32.totalorder %s9, 0
    %p85 = por %p83, %p84
    %p86 = scmp.ne.s32.totalorder %s78, %s80
    %p87 = scmp.eq.s32.totalorder %s14, 1
    %p88 = por %p86, %p87
    %p89 = scmp.ne.s32.totalorder %s80, %s81
    %p90 = scmp.eq.s32.totalorder %s14, 0
    %p91 = por %p89, %p90
    %p92 = scmp.ne.s32.totalorder %s80, %s81
    %p93 = scmp.eq.s32.totalorder %s15, 1
    %p94 = por %p92, %p93
    %p96 = scmp.ne.s32.totalorder %s81, %s95
    %p97 = scmp.eq.s32.totalorder %s15, 0
    %p98 = por %p96, %p97
    %s99 = ssub.s32 %s16, %s28
    %s100 = ssub.s32 %s17, %s24
    %s101 = sor.u32 %s99, %s100
    %p102 = scmp.eq.s32.totalorder %s101, 0
    %s104 = sadd.s32 %s103, 1
    %s105 = scalar_select %p102, %s103, %s104
    %p108 = pneg %p102
    %p109 = scmp.eq.s32.totalorder %s9, 1
    %p110 = por %p108, %p109
    %p111 = scmp.ne.s32.totalorder %s103, %s106
    %p112 = scmp.eq.s32.totalorder %s9, 0
    %p113 = por %p111, %p112
    %p114 = scmp.ne.s32.totalorder %s103, %s106
    %p115 = scmp.eq.s32.totalorder %s14, 1
    %p116 = por %p114, %p115
    %p117 = scmp.ne.s32.totalorder %s106, %s107
    %p118 = scmp.eq.s32.totalorder %s14, 0
    %p119 = por %p117, %p118
    %p120 = scmp.ne.s32.totalorder %s106, %s107
    %p121 = scmp.eq.s32.totalorder %s15, 1
    %p122 = por %p120, %p121
    %p124 = scmp.ne.s32.totalorder %s107, %s123
    %p125 = scmp.eq.s32.totalorder %s15, 0
    %p126 = por %p124, %p125
    %p127 = scmp.le.s32.totalorder 1, %s9
    %p128 = scmp.lt.s32.totalorder %s9, 3
    %p129 = pnand %p127, %p128
    %p130 = pneg %p129
    // Predicated region
    $region9: #{attention_head.5} parent=5 // pred_check
      _
    $region10: #{attention_head.5} parent=5 // pred_check_branch
      %132 = sbr.rel (%p129) target = $region12
    $region11: #{attention_head.5} parent=5 // pred_region
      %s133 = ssub.s32 %s9, 1
      // Predicated region
      $region13: #{attention_head.5} parent=11 // pred_check
        %p134 = pneg %p70
      $region14: #{attention_head.5} parent=11 // pred_check_branch
        %136 = sbr.rel (%p134) target = $region16
      $region15: #{attention_head.5} parent=11 // pred_region
        _
      $region16: #{attention_head.5} parent=11 // pred_fallthru
        _
      // Predicated region
      $region17: #{attention_head.5} parent=11 // pred_check
        %p137 = pneg %p91
      $region18: #{attention_head.5} parent=11 // pred_check_branch
        %139 = sbr.rel (%p137) target = $region20
      $region19: #{attention_head.5} parent=11 // pred_region
        _
      $region20: #{attention_head.5} parent=11 // pred_fallthru
        _
    $region12: #{attention_head.5} parent=5 // pred_fallthru
      _
    %p140 = scmp.lt.s32.totalorder %s9, 2
    // Predicated region
    $region21: #{attention_head.5} parent=5 // pred_check
      %p141 = pneg %p140
    $region22: #{attention_head.5} parent=5 // pred_check_branch
      %143 = sbr.rel (%p141) target = $region24
    $region23: #{attention_head.5} parent=5 // pred_region
      // Predicated region
      $region25: #{attention_head.5} parent=23 // pred_check
        %p144 = pneg %p43
      $region26: #{attention_head.5} parent=23 // pred_check_branch
        %146 = sbr.rel (%p144) target = $region28
      $region27: #{attention_head.5} parent=23 // pred_region
        %p147 = scmp.lt.s32.totalorder %s16, 1
        %s148 = scalar_select %p147, %s16, 1
        %p149 = scmp.lt.s32.totalorder %s17, 0
        %s150 = scalar_select %p149, %s17, 0
        %s151 = sadd.s32 %s150, %s148
        %s152 = smul.addr %s151, 8
        %s153 = scalar_lea.vmem %s0, %s152
      $region28: #{attention_head.5} parent=23 // pred_fallthru
        _
    $region24: #{attention_head.5} parent=5 // pred_fallthru
      _
    %p154 = scmp.le.s32.totalorder 1, %s9
    %p155 = scmp.lt.s32.totalorder %s9, 3
    %p156 = pnand %p154, %p155
    %p157 = pneg %p156
    // Predicated region
    $region29: #{attention_head.5} parent=5 // pred_check
      _
    $region30: #{attention_head.5} parent=5 // pred_check_branch
      %159 = sbr.rel (%p156) target = $region32
    $region31: #{attention_head.5} parent=5 // pred_region
      %s160 = ssub.s32 %s9, 1
      %p161 = scmp.lt.s32.totalorder %s18, 1
      %s162 = scalar_select %p161, %s18, 1
      %p163 = scmp.lt.s32.totalorder %s19, 0
      %s164 = scalar_select %p163, %s19, 0
      %s165 = sadd.s32 %s164, %s162
      %s166 = smul.addr %s165, 8
      %s167 = scalar_lea.vmem %s0, %s166
      %p168 = pneg %p49
      %p169 = pneg %p46
      %p170 = pneg %p70
      %p171 = pneg %p67
      %p172 = pneg %p91
      %p173 = pneg %p88
      %p174 = pneg %p119
      %p175 = pneg %p116
      %p176 = scmp.lt.s32.totalorder %s18, 1
      %s177 = scalar_select %p176, %s18, 1
      %p178 = scmp.lt.s32.totalorder %s19, 0
      %s179 = scalar_select %p178, %s19, 0
      %s180 = sadd.s32 %s179, %s177
      %s181 = smul.addr %s180, 8
      %s182 = scalar_lea.vmem %s3, %s181
      %p183 = scmp.lt.s32.totalorder %s18, 1
      %s184 = scalar_select %p183, %s18, 1
      %p185 = scmp.lt.s32.totalorder %s19, 0
      %s186 = scalar_select %p185, %s19, 0
      %s187 = sadd.s32 %s186, %s184
      %s188 = smul.addr %s187, 8
      %s189 = scalar_lea.vmem %s0, %s188
      %p190 = scmp.lt.s32.totalorder %s18, 1
      %s191 = scalar_select %p190, %s18, 1
      %p192 = scmp.lt.s32.totalorder %s19, 0
      %s193 = scalar_select %p192, %s19, 0
      %s194 = sadd.s32 %s193, %s191
      %s195 = smul.addr %s194, 8
      %s196 = scalar_lea.vmem %s3, %s195
      %v197 = vld [vmem:[%s189] sm:$0xff]
      %v198 = vld [vmem:[%s1] sm:$0xff]
      %v199 = vld [vmem:[%s1 + $0x8] sm:$0xff]
      %v200 = vld [vmem:[%s1 + $0x10] sm:$0xff]
      %v201 = vld [vmem:[%s1 + $0x18] sm:$0xff]
      %v202 = vld [vmem:[%s2] sm:$0x1]
      %v204 = vlaneseq
      %v205 = vshrl.u32 %v204, 7
      %v206 = vsub.s32 0, %v205
      %v207 = vrot.slane %v202, %v206
      %vm209 = vcmask 261120
      %v211 = vsel %vm209, %v197, 0
      %213 = vmatprep.subr.mxu0 0.0
      %214 = vmatpush1.msra.mxu0 %v198
      %215 = vmatprep.subr.mxu0 0.0
      %216 = vmatpush1.msra.mxu0 %v199
      %217 = vmatprep.subr.mxu0 0.0
      %218 = vmatpush1.msra.mxu0 %v200
      %219 = vmatprep.subr.mxu0 0.0
      %220 = vmatpush1.msra.mxu0 %v201
      %221 = vmatprep.subr.mxu0 0.0
      %222 = vmatpush1.msra.mxu0 0.0
      %223 = vmatprep.subr.mxu0 0.0
      %224 = vmatpush1.msra.mxu0 0.0
      %225 = vmatprep.subr.mxu0 0.0
      %226 = vmatpush1.msra.mxu0 0.0
      %227 = vmatprep.subr.mxu0 0.0
      %228 = vmatpush1.msra.mxu0 0.0
      %229 = vmatprep.subr.mxu0 0.0
      %230 = vmatpush1.msra.mxu0 0.0
      %231 = vmatprep.subr.mxu0 0.0
      %232 = vmatpush1.msra.mxu0 0.0
      %233 = vmatprep.subr.mxu0 0.0
      %234 = vmatpush1.msra.mxu0 0.0
      %235 = vmatprep.subr.mxu0 0.0
      %236 = vmatpush1.msra.mxu0 0.0
      %237 = vmatprep.subr.mxu0 0.0
      %238 = vmatpush1.msra.mxu0 0.0
      %239 = vmatprep.subr.mxu0 0.0
      %240 = vmatpush1.msra.mxu0 0.0
      %241 = vmatprep.subr.mxu0 0.0
      %242 = vmatpush1.msra.mxu0 0.0
      %243 = vmatprep.subr.mxu0 0.0
      %244 = vmatpush1.msra.mxu0 0.0
      %245 = vmatprep.subr.mxu0 0.0
      %246 = vmatpush1.msra.mxu0 0.0
      %247 = vmatprep.subr.mxu0 0.0
      %248 = vmatpush1.msra.mxu0 0.0
      %249 = vmatprep.subr.mxu0 0.0
      %250 = vmatpush1.msra.mxu0 0.0
      %251 = vmatprep.subr.mxu0 0.0
      %252 = vmatpush1.msra.mxu0 0.0
      %253 = vmatprep.subr.mxu0 0.0
      %254 = vmatpush1.msra.mxu0 0.0
      %255 = vmatprep.subr.mxu0 0.0
      %256 = vmatpush1.msra.mxu0 0.0
      %257 = vmatprep.subr.mxu0 0.0
      %258 = vmatpush1.msra.mxu0 0.0
      %259 = vmatprep.subr.mxu0 0.0
      %260 = vmatpush1.msra.mxu0 0.0
      %261 = vmatprep.subr.mxu0 0.0
      %262 = vmatpush1.msra.mxu0 0.0
      %263 = vmatprep.subr.mxu0 0.0
      %264 = vmatpush1.msra.mxu0 0.0
      %265 = vmatprep.subr.mxu0 0.0
      %266 = vmatpush1.msra.mxu0 0.0
      %267 = vmatprep.subr.mxu0 0.0
      %268 = vmatpush1.msra.mxu0 0.0
      %269 = vmatprep.subr.mxu0 0.0
      %270 = vmatpush1.msra.mxu0 0.0
      %271 = vmatprep.subr.mxu0 0.0
      %272 = vmatpush1.msra.mxu0 0.0
      %273 = vmatprep.subr.mxu0 0.0
      %274 = vmatpush1.msra.mxu0 0.0
      %275 = vmatprep.subr.mxu0 0.0
      %276 = vmatpush1.msra.mxu0 0.0
      %277 = vmatprep.mubr.f32.mxu0 0.0
      %278 = vmatmul.mubr.f32.gmra.mrb[0].mxu0 %v211
      %v279 = vpop.f32.mrb[0].mxu0
      %v280 = vadd.f32 %v207, %v279
      %v281 = vpop.f32.mrb[0].mxu0
      %282 = vdwg.mxu0
      %vm283 = vcmask 130048
      %284 = vst.msk [vmem:[%s196] sm:$0xff] %vm283, %v280
      %p285 = scmp.lt.s32.totalorder %s18, 1
      %s286 = scalar_select %p285, %s18, 1
      %p287 = scmp.lt.s32.totalorder %s19, 0
      %s288 = scalar_select %p287, %s19, 0
      %s289 = sadd.s32 %s288, %s286
      %s290 = smul.addr %s289, 8
      %s291 = scalar_lea.vmem %s3, %s290
      // Predicated region
      $region33: #{attention_head.5} parent=31 // pred_check
        %p292 = pneg %p116
      $region34: #{attention_head.5} parent=31 // pred_check_branch
        %294 = sbr.rel (%p292) target = $region36
      $region35: #{attention_head.5} parent=31 // pred_region
        _
      $region36: #{attention_head.5} parent=31 // pred_fallthru
        _
    $region32: #{attention_head.5} parent=5 // pred_fallthru
      _
    %p295 = scmp.le.s32.totalorder 2, %s9
    // Predicated region
    $region37: #{attention_head.5} parent=5 // pred_check
      %p296 = pneg %p295
    $region38: #{attention_head.5} parent=5 // pred_check_branch
      %298 = sbr.rel (%p296) target = $region40
    $region39: #{attention_head.5} parent=5 // pred_region
      %s299 = ssub.s32 %s9, 2
      // Predicated region
      $region41: #{attention_head.5} parent=39 // pred_check
        %p300 = pneg %p122
      $region42: #{attention_head.5} parent=39 // pred_check_branch
        %302 = sbr.rel (%p300) target = $region44
      $region43: #{attention_head.5} parent=39 // pred_region
        %p303 = scmp.lt.s32.totalorder %s20, 1
        %s304 = scalar_select %p303, %s20, 1
        %p305 = scmp.lt.s32.totalorder %s21, 0
        %s306 = scalar_select %p305, %s21, 0
        %s307 = sadd.s32 %s306, %s304
        %s308 = smul.addr %s307, 8
        %s309 = scalar_lea.vmem %s3, %s308
      $region44: #{attention_head.5} parent=39 // pred_fallthru
        _
    $region40: #{attention_head.5} parent=5 // pred_fallthru
      _
  $region6: #{attention_head.5} parent=0 // loop_footer
    %s13 = sadd.s32 1, %s9
  $region7: #{attention_head.5} parent=0 // loop_footer_branch
    %8 = sbr.rel target = $region3
  $region8: #{attention_head.5} parent=0 // loop_exit
    _

// kernel: attention_head.7
$region0: #{attention_head.7}
  #allocation0 [shape = 'u32[]', space=smem, size = 0x4, offset = 0x4, fixed_abs, tag = 'smem constant byte address 0x4 - core index']
  #allocation1 [shape = 'u32[144,128]{1,0:T(1,128)}', space=vmem, size = 0x12000, scoped, tag = 'internal scratch']
  #allocation2 [shape = 'f32[8,1]{1,0:T(8,128)}', space=vmem, size = 0x1000, scoped, tag = 'scratch operand']
  #allocation3 [shape = 'f32[8,1]{1,0:T(8,128)}', space=vmem, size = 0x1000, scoped, tag = 'scratch operand']
  #allocation4 [shape = 'f32[8,16]{1,0:T(8,128)}', space=vmem, size = 0x1000, scoped, tag = 'scratch operand']
  %s0 = inlined_call_operand.vmem [shape: f32[2,8,16], index: 0, kind: input, shape index: {}]
  %s1 = inlined_call_operand.vmem [shape: f32[2,8,16], index: 1, kind: input, shape index: {}]
  %s2 = inlined_call_operand.vmem [shape: f32[2,8,16], index: 2, kind: input, shape index: {}]
  %s3 = inlined_call_operand.hbm [shape: f32[2,8,16], index: 3, kind: output, shape index: {}]
  %s4 = sld [smem:[#allocation0]]
  $region53: #{attention_head.7} parent=0
    _
  %s6 = ssub.s32 1, %s4
  %s7 = scalar_select 0, %s6, %s4
  $region1: #{attention_head.7} parent=0
    #allocation5 [shape = 'u8[8192]{0}', space=vmem, size = 0x2000, scoped, tag = 'output window, operand 0']
    #allocation6 [shape = 's32[2]{0}', space=sflag, size = 0x8, scoped, tag = 'scoped memory for attention_head.7']
    %8 = vsyncpa [#allocation6], 0
    %s9 = scalar_lea.sflag [#allocation6], 1
    %10 = vsyncpa %s9, 0
    loop: start=0, step=1, limit=4
    $region2: #{attention_head.7} parent=1 // loop_pre_header
      _
    $region3: #{attention_head.7} parent=1 // loop_header
      %s12 = sphi 0, %s16
      %p13 = scmp.ge.s32.totalorder %s12, 4
      %s19 = sphi 0, %s38
      %s20 = sphi 0, %s34
      %s21 = sphi 0, %s30
      %s22 = sphi 0, %s19
      %s23 = sphi 0, %s20
      %s24 = sphi 0, %s21
      %s25 = sphi 0, %s22
      %s26 = sphi 0, %s23
      %s27 = sphi 0, %s24
      %s43 = sphi 0, %s45
      %s46 = sphi 0, %s43
      %s47 = sphi 0, %s46
      %s63 = sphi 0, %s47
      %s71 = sphi 0, %s73
      %s74 = sphi 0, %s71
      %s75 = sphi 0, %s74
      %s91 = sphi 0, %s75
      %s99 = sphi 0, %s101
      %s102 = sphi 0, %s99
      %s103 = sphi 0, %s102
      %s119 = sphi 0, %s103
      %s127 = sphi 0, %s129
      %s130 = sphi 0, %s127
      %s131 = sphi 0, %s130
      %s147 = sphi 0, %s131
    $region4: #{attention_head.7} parent=1 // loop_header_branch
      %15 = sbr.rel (%p13) target = $region8
    $region5: #{attention_head.7} parent=1 // loop_body
      %s17 = ssub.s32 %s12, 1
      %s18 = ssub.s32 %s12, 2
      %s28 = sadd.s32 1, %s21
      %p29 = scmp.ge.s32.totalorder %s28, 1
      %s30 = scalar_select %p29, 0, %s28
      %s31 = sadd.s32 1, %s20
      %s32 = scalar_select %p29, %s31, %s20
      %p33 = scmp.ge.s32.totalorder %s32, 1
      %s34 = scalar_select %p33, 0, %s32
      %s35 = sadd.s32 1, %s19
      %s36 = scalar_select %p33, %s35, %s19
      %p37 = scmp.ge.s32.totalorder %s36, 2
      %s38 = scalar_select %p37, 0, %s36
      %s39 = ssub.s32 %s19, %s38
      %s40 = ssub.s32 %s20, %s34
      %s41 = sor.u32 %s39, %s40
      %p42 = scmp.eq.s32.totalorder %s41, 0
      %s44 = sadd.s32 %s43, 1
      %s45 = scalar_select %p42, %s43, %s44
      %p48 = pneg %p42
      %p49 = scmp.eq.s32.totalorder %s12, 1
      %p50 = por %p48, %p49
      %p51 = scmp.ne.s32.totalorder %s43, %s46
      %p52 = scmp.eq.s32.totalorder %s12, 0
      %p53 = por %p51, %p52
      %p54 = scmp.ne.s32.totalorder %s43, %s46
      %p55 = scmp.eq.s32.totalorder %s17, 1
      %p56 = por %p54, %p55
      %p57 = scmp.ne.s32.totalorder %s46, %s47
      %p58 = scmp.eq.s32.totalorder %s17, 0
      %p59 = por %p57, %p58
      %p60 = scmp.ne.s32.totalorder %s46, %s47
      %p61 = scmp.eq.s32.totalorder %s18, 1
      %p62 = por %p60, %p61
      %p64 = scmp.ne.s32.totalorder %s47, %s63
      %p65 = scmp.eq.s32.totalorder %s18, 0
      %p66 = por %p64, %p65
      %s67 = ssub.s32 %s19, %s38
      %s68 = ssub.s32 %s21, %s30
      %s69 = sor.u32 %s67, %s68
      %p70 = scmp.eq.s32.totalorder %s69, 0
      %s72 = sadd.s32 %s71, 1
      %s73 = scalar_select %p70, %s71, %s72
      %p76 = pneg %p70
      %p77 = scmp.eq.s32.totalorder %s12, 1
      %p78 = por %p76, %p77
      %p79 = scmp.ne.s32.totalorder %s71, %s74
      %p80 = scmp.eq.s32.totalorder %s12, 0
      %p81 = por %p79, %p80
      %p82 = scmp.ne.s32.totalorder %s71, %s74
      %p83 = scmp.eq.s32.totalorder %s17, 1
      %p84 = por %p82, %p83
      %p85 = scmp.ne.s32.totalorder %s74, %s75
      %p86 = scmp.eq.s32.totalorder %s17, 0
      %p87 = por %p85, %p86
      %p88 = scmp.ne.s32.totalorder %s74, %s75
      %p89 = scmp.eq.s32.totalorder %s18, 1
      %p90 = por %p88, %p89
      %p92 = scmp.ne.s32.totalorder %s75, %s91
      %p93 = scmp.eq.s32.totalorder %s18, 0
      %p94 = por %p92, %p93
      %s95 = ssub.s32 %s19, %s38
      %s96 = ssub.s32 %s21, %s30
      %s97 = sor.u32 %s95, %s96
      %p98 = scmp.eq.s32.totalorder %s97, 0
      %s100 = sadd.s32 %s99, 1
      %s101 = scalar_select %p98, %s99, %s100
      %p104 = pneg %p98
      %p105 = scmp.eq.s32.totalorder %s12, 1
      %p106 = por %p104, %p105
      %p107 = scmp.ne.s32.totalorder %s99, %s102
      %p108 = scmp.eq.s32.totalorder %s12, 0
      %p109 = por %p107, %p108
      %p110 = scmp.ne.s32.totalorder %s99, %s102
      %p111 = scmp.eq.s32.totalorder %s17, 1
      %p112 = por %p110, %p111
      %p113 = scmp.ne.s32.totalorder %s102, %s103
      %p114 = scmp.eq.s32.totalorder %s17, 0
      %p115 = por %p113, %p114
      %p116 = scmp.ne.s32.totalorder %s102, %s103
      %p117 = scmp.eq.s32.totalorder %s18, 1
      %p118 = por %p116, %p117
      %p120 = scmp.ne.s32.totalorder %s103, %s119
      %p121 = scmp.eq.s32.totalorder %s18, 0
      %p122 = por %p120, %p121
      %s123 = ssub.s32 %s19, %s38
      %s124 = ssub.s32 %s20, %s34
      %s125 = sor.u32 %s123, %s124
      %p126 = scmp.eq.s32.totalorder %s125, 0
      %s128 = sadd.s32 %s127, 1
      %s129 = scalar_select %p126, %s127, %s128
      %p132 = pneg %p126
      %p133 = scmp.eq.s32.totalorder %s12, 1
      %p134 = por %p132, %p133
      %p135 = scmp.ne.s32.totalorder %s127, %s130
      %p136 = scmp.eq.s32.totalorder %s12, 0
      %p137 = por %p135, %p136
      %p138 = scmp.ne.s32.totalorder %s127, %s130
      %p139 = scmp.eq.s32.totalorder %s17, 1
      %p140 = por %p138, %p139
      %p141 = scmp.ne.s32.totalorder %s130, %s131
      %p142 = scmp.eq.s32.totalorder %s17, 0
      %p143 = por %p141, %p142
      %p144 = scmp.ne.s32.totalorder %s130, %s131
      %p145 = scmp.eq.s32.totalorder %s18, 1
      %p146 = por %p144, %p145
      %p148 = scmp.ne.s32.totalorder %s131, %s147
      %p149 = scmp.eq.s32.totalorder %s18, 0
      %p150 = por %p148, %p149
      %p151 = scmp.le.s32.totalorder 1, %s12
      %p152 = scmp.lt.s32.totalorder %s12, 3
      %p153 = pnand %p151, %p152
      %p154 = pneg %p153
      // Predicated region
      $region9: #{attention_head.7} parent=5 // pred_check
        _
      $region10: #{attention_head.7} parent=5 // pred_check_branch
        %156 = sbr.rel (%p153) target = $region12
      $region11: #{attention_head.7} parent=5 // pred_region
        %s157 = ssub.s32 %s12, 1
      $region12: #{attention_head.7} parent=5 // pred_fallthru
        _
      %p158 = scmp.lt.s32.totalorder %s12, 2
      // Predicated region
      $region13: #{attention_head.7} parent=5 // pred_check
        %p159 = pneg %p158
      $region14: #{attention_head.7} parent=5 // pred_check_branch
        %161 = sbr.rel (%p159) target = $region16
      $region15: #{attention_head.7} parent=5 // pred_region
        // Predicated region
        $region17: #{attention_head.7} parent=15 // pred_check
          %p162 = pneg %p53
        $region18: #{attention_head.7} parent=15 // pred_check_branch
          %164 = sbr.rel (%p162) target = $region20
        $region19: #{attention_head.7} parent=15 // pred_region
          %p165 = scmp.lt.s32.totalorder %s19, 1
          %s166 = scalar_select %p165, %s19, 1
          %p167 = scmp.lt.s32.totalorder %s20, 0
          %s168 = scalar_select %p167, %s20, 0
          %s169 = sadd.s32 %s168, %s166
          %s170 = smul.addr %s169, 8
          %s171 = scalar_lea.vmem %s0, %s170
        $region20: #{attention_head.7} parent=15 // pred_fallthru
          _
        // Predicated region
        $region21: #{attention_head.7} parent=15 // pred_check
          %p172 = pneg %p81
        $region22: #{attention_head.7} parent=15 // pred_check_branch
          %174 = sbr.rel (%p172) target = $region24
        $region23: #{attention_head.7} parent=15 // pred_region
          %p175 = scmp.lt.s32.totalorder %s19, 1
          %s176 = scalar_select %p175, %s19, 1
          %p177 = scmp.lt.s32.totalorder %s21, 0
          %s178 = scalar_select %p177, %s21, 0
          %s179 = sadd.s32 %s178, %s176
          %s180 = smul.addr %s179, 8
          %s181 = scalar_lea.vmem %s1, %s180
        $region24: #{attention_head.7} parent=15 // pred_fallthru
          _
        // Predicated region
        $region25: #{attention_head.7} parent=15 // pred_check
          %p182 = pneg %p109
        $region26: #{attention_head.7} parent=15 // pred_check_branch
          %184 = sbr.rel (%p182) target = $region28
        $region27: #{attention_head.7} parent=15 // pred_region
          %p185 = scmp.lt.s32.totalorder %s19, 1
          %s186 = scalar_select %p185, %s19, 1
          %p187 = scmp.lt.s32.totalorder %s21, 0
          %s188 = scalar_select %p187, %s21, 0
          %s189 = sadd.s32 %s188, %s186
          %s190 = smul.addr %s189, 8
          %s191 = scalar_lea.vmem %s2, %s190
        $region28: #{attention_head.7} parent=15 // pred_fallthru
          _
      $region16: #{attention_head.7} parent=5 // pred_fallthru
        _
      %p192 = scmp.le.s32.totalorder 1, %s12
      %p193 = scmp.lt.s32.totalorder %s12, 3
      %p194 = pnand %p192, %p193
      %p195 = pneg %p194
      // Predicated region
      $region29: #{attention_head.7} parent=5 // pred_check
        _
      $region30: #{attention_head.7} parent=5 // pred_check_branch
        %197 = sbr.rel (%p194) target = $region32
      $region31: #{attention_head.7} parent=5 // pred_region
        %s198 = ssub.s32 %s12, 1
        %p199 = scmp.lt.s32.totalorder %s22, 1
        %s200 = scalar_select %p199, %s22, 1
        %p201 = scmp.lt.s32.totalorder %s23, 0
        %s202 = scalar_select %p201, %s23, 0
        %s203 = sadd.s32 %s202, %s200
        %s204 = smul.addr %s203, 8
        %s205 = scalar_lea.vmem %s0, %s204
        %p206 = pneg %p59
        %p207 = pneg %p56
        %p208 = scmp.lt.s32.totalorder %s22, 1
        %s209 = scalar_select %p208, %s22, 1
        %p210 = scmp.lt.s32.totalorder %s24, 0
        %s211 = scalar_select %p210, %s24, 0
        %s212 = sadd.s32 %s211, %s209
        %s213 = smul.addr %s212, 8
        %s214 = scalar_lea.vmem %s1, %s213
        %p215 = pneg %p87
        %p216 = pneg %p84
        %p217 = scmp.lt.s32.totalorder %s22, 1
        %s218 = scalar_select %p217, %s22, 1
        %p219 = scmp.lt.s32.totalorder %s24, 0
        %s220 = scalar_select %p219, %s24, 0
        %s221 = sadd.s32 %s220, %s218
        %s222 = smul.addr %s221, 8
        %s223 = scalar_lea.vmem %s2, %s222
        %p224 = pneg %p115
        %p225 = pneg %p112
        %p226 = pneg %p143
        %p227 = pneg %p140
        %s228 = sand.u32 %s130, 1
        %s229 = scalar_lea.sflag [#allocation6], %s228
        %s230 = sand.u32 %s130, 1
        %s231 = smul.addr %s230, 8
        %s232 = scalar_lea.vmem [#allocation5], %s231
        %p233 = scmp.lt.s32.totalorder %s22, 1
        %s234 = scalar_select %p233, %s22, 1
        %p235 = scmp.lt.s32.totalorder %s23, 0
        %s236 = scalar_select %p235, %s23, 0
        %s237 = sadd.s32 %s236, %s234
        %s238 = smul.addr %s237, 8
        %s239 = scalar_lea.vmem %s0, %s238
        %p240 = scmp.lt.s32.totalorder %s22, 1
        %s241 = scalar_select %p240, %s22, 1
        %p242 = scmp.lt.s32.totalorder %s24, 0
        %s243 = scalar_select %p242, %s24, 0
        %s244 = sadd.s32 %s243, %s241
        %s245 = smul.addr %s244, 8
        %s246 = scalar_lea.vmem %s1, %s245
        %p247 = scmp.lt.s32.totalorder %s22, 1
        %s248 = scalar_select %p247, %s22, 1
        %p249 = scmp.lt.s32.totalorder %s24, 0
        %s250 = scalar_select %p249, %s24, 0
        %s251 = sadd.s32 %s250, %s248
        %s252 = smul.addr %s251, 8
        %s253 = scalar_lea.vmem %s2, %s252
        %p254 = scmp.eq.s32.totalorder %s24, 0
        // Predicated region
        $region33: #{attention_head.7} parent=31 // pred_check
          %p255 = pneg %p254
        $region34: #{attention_head.7} parent=31 // pred_check_branch
          %257 = sbr.rel (%p255) target = $region36
        $region35: #{attention_head.7} parent=31 // pred_region
          %vm258 = vcmask 7168
          %259 = vst.msk [vmem:[#allocation2] sm:$0xff] %vm258, -inf
          %260 = vst.msk [vmem:[#allocation3] sm:$0xff] %vm258, 0.0
          %vm261 = vcmask 130048
          %262 = vst.msk [vmem:[#allocation4] sm:$0xff] %vm261, 0.0
        $region36: #{attention_head.7} parent=31 // pred_fallthru
          _
        %v263 = vld [vmem:[%s239] sm:$0xff]
        %v264 = vld [vmem:[%s246] sm:$0xff]
        %vm265 = vcmask 130048
        %v267 = vsel %vm265, %v263, 0
        %v270 = vsel %vm265, %v264, 0
        %272 = vmatprep.subr.mxu0 0.0
        %273 = vmatpush1.xpose.msra.mxu0 %v270
        %274 = vmatprep.subr.mxu0 0.0
        %275 = vmatpush1.xpose.msra.mxu0 0.0
        %276 = vmatprep.subr.mxu0 0.0
        %277 = vmatpush1.xpose.msra.mxu0 0.0
        %278 = vmatprep.subr.mxu0 0.0
        %279 = vmatpush1.xpose.msra.mxu0 0.0
        %280 = vmatprep.subr.mxu0 0.0
        %281 = vmatpush1.xpose.msra.mxu0 0.0
        %282 = vmatprep.subr.mxu0 0.0
        %283 = vmatpush1.xpose.msra.mxu0 0.0
        %284 = vmatprep.subr.mxu0 0.0
        %285 = vmatpush1.xpose.msra.mxu0 0.0
        %286 = vmatprep.subr.mxu0 0.0
        %287 = vmatpush1.xpose.msra.mxu0 0.0
        %288 = vmatprep.subr.mxu0 0.0
        %289 = vmatpush1.xpose.msra.mxu0 0.0
        %290 = vmatprep.subr.mxu0 0.0
        %291 = vmatpush1.xpose.msra.mxu0 0.0
        %292 = vmatprep.subr.mxu0 0.0
        %293 = vmatpush1.xpose.msra.mxu0 0.0
        %294 = vmatprep.subr.mxu0 0.0
        %295 = vmatpush1.xpose.msra.mxu0 0.0
        %296 = vmatprep.subr.mxu0 0.0
        %297 = vmatpush1.xpose.msra.mxu0 0.0
        %298 = vmatprep.subr.mxu0 0.0
        %299 = vmatpush1.xpose.msra.mxu0 0.0
        %300 = vmatprep.subr.mxu0 0.0
        %301 = vmatpush1.xpose.msra.mxu0 0.0
        %302 = vmatprep.subr.mxu0 0.0
        %303 = vmatpush1.xpose.msra.mxu0 0.0
        %304 = vmatprep.subr.mxu0 0.0
        %305 = vmatpush1.xpose.msra.mxu0 0.0
        %306 = vmatprep.subr.mxu0 0.0
        %307 = vmatpush1.xpose.msra.mxu0 0.0
        %308 = vmatprep.subr.mxu0 0.0
        %309 = vmatpush1.xpose.msra.mxu0 0.0
        %310 = vmatprep.subr.mxu0 0.0
        %311 = vmatpush1.xpose.msra.mxu0 0.0
        %312 = vmatprep.subr.mxu0 0.0
        %313 = vmatpush1.xpose.msra.mxu0 0.0
        %314 = vmatprep.subr.mxu0 0.0
        %315 = vmatpush1.xpose.msra.mxu0 0.0
        %316 = vmatprep.subr.mxu0 0.0
        %317 = vmatpush1.xpose.msra.mxu0 0.0
        %318 = vmatprep.subr.mxu0 0.0
        %319 = vmatpush1.xpose.msra.mxu0 0.0
        %320 = vmatprep.subr.mxu0 0.0
        %321 = vmatpush1.xpose.msra.mxu0 0.0
        %322 = vmatprep.subr.mxu0 0.0
        %323 = vmatpush1.xpose.msra.mxu0 0.0
        %324 = vmatprep.subr.mxu0 0.0
        %325 = vmatpush1.xpose.msra.mxu0 0.0
        %326 = vmatprep.subr.mxu0 0.0
        %327 = vmatpush1.xpose.msra.mxu0 0.0
        %328 = vmatprep.subr.mxu0 0.0
        %329 = vmatpush1.xpose.msra.mxu0 0.0
        %330 = vmatprep.subr.mxu0 0.0
        %331 = vmatpush1.xpose.msra.mxu0 0.0
        %332 = vmatprep.subr.mxu0 0.0
        %333 = vmatpush1.xpose.msra.mxu0 0.0
        %334 = vmatprep.subr.mxu0 0.0
        %335 = vmatpush1.xpose.msra.mxu0 0.0
        %336 = vmatprep.mubr.f32.mxu0 0.0
        %337 = vmatmul.mubr.f32.gmra.mrb[0].mxu0 %v267
        %v338 = vpop.f32.mrb[0].mxu0
        %v339 = vadd.f32 0.0, %v338
        %v340 = vpop.f32.mrb[0].mxu0
        %341 = vdwg.mxu0
        %v342 = vld [vmem:[#allocation2] sm:$0xff]
        %vm343 = vcmask 64512
        %v344 = vsel %vm343, %v339, -inf
        %345 = vmax.xlane.f32.xlu0 %v344
        %v346 = vpop.xlane.xlu0 %345
        %v347 = vmax.f32 %v342, %v346
        %v348 = vsub.f32 %v342, %v347
        %v349 = vmul.f32 %v348, 1.442695
        %v350 = vpow.pop %v349
        %352 = vset.pattern.permute.xlu0 0
        %353 = vperm.xlu0 %352, %v347
        %v354 = vpop.permute.xlu0 %353
        %v356 = vsub.f32 %v339, %v354
        %v357 = vmul.f32 %v356, 1.442695
        %v358 = vpow.pop %v357
        %v359 = vld [vmem:[#allocation3] sm:$0xff]
        %v360 = vmul.f32 %v350, %v359
        %v361 = vsel %vm343, %v358, 0.0
        %362 = vadd.xlane.f32.xlu0 %v361
        %v363 = vpop.xlane.xlu0 %362
        %v364 = vadd.f32 %v360, %v363
        %vm365 = vcmask 7168
        %366 = vst.msk [vmem:[#allocation3] sm:$0xff] %vm365, %v364
        %v367 = vld [vmem:[#allocation4] sm:$0xff]
        %369 = vset.pattern.permute.xlu0 0
        %370 = vperm.xlu0 %369, %v350
        %v371 = vpop.permute.xlu0 %370
        %v373 = vmul.f32 %v371, %v367
        %v374 = vld [vmem:[%s253] sm:$0xff]
        %v376 = vsel %vm343, %v358, 0
        %378 = vmatprep.subr.mxu0 0.0
        %379 = vmatpush1.msra.mxu0 %v374
        %380 = vmatprep.subr.mxu0 0.0
        %381 = vmatpush1.msra.mxu0 0.0
        %382 = vmatprep.subr.mxu0 0.0
        %383 = vmatpush1.msra.mxu0 0.0
        %384 = vmatprep.subr.mxu0 0.0
        %385 = vmatpush1.msra.mxu0 0.0
        %386 = vmatprep.subr.mxu0 0.0
        %387 = vmatpush1.msra.mxu0 0.0
        %388 = vmatprep.subr.mxu0 0.0
        %389 = vmatpush1.msra.mxu0 0.0
        %390 = vmatprep.subr.mxu0 0.0
        %391 = vmatpush1.msra.mxu0 0.0
        %392 = vmatprep.subr.mxu0 0.0
        %393 = vmatpush1.msra.mxu0 0.0
        %394 = vmatprep.subr.mxu0 0.0
        %395 = vmatpush1.msra.mxu0 0.0
        %396 = vmatprep.subr.mxu0 0.0
        %397 = vmatpush1.msra.mxu0 0.0
        %398 = vmatprep.subr.mxu0 0.0
        %399 = vmatpush1.msra.mxu0 0.0
        %400 = vmatprep.subr.mxu0 0.0
        %401 = vmatpush1.msra.mxu0 0.0
        %402 = vmatprep.subr.mxu0 0.0
        %403 = vmatpush1.msra.mxu0 0.0
        %404 = vmatprep.subr.mxu0 0.0
        %405 = vmatpush1.msra.mxu0 0.0
        %406 = vmatprep.subr.mxu0 0.0
        %407 = vmatpush1.msra.mxu0 0.0
        %408 = vmatprep.subr.mxu0 0.0
        %409 = vmatpush1.msra.mxu0 0.0
        %410 = vmatprep.subr.mxu0 0.0
        %411 = vmatpush1.msra.mxu0 0.0
        %412 = vmatprep.subr.mxu0 0.0
        %413 = vmatpush1.msra.mxu0 0.0
        %414 = vmatprep.subr.mxu0 0.0
        %415 = vmatpush1.msra.mxu0 0.0
        %416 = vmatprep.subr.mxu0 0.0
        %417 = vmatpush1.msra.mxu0 0.0
        %418 = vmatprep.subr.mxu0 0.0
        %419 = vmatpush1.msra.mxu0 0.0
        %420 = vmatprep.subr.mxu0 0.0
        %421 = vmatpush1.msra.mxu0 0.0
        %422 = vmatprep.subr.mxu0 0.0
        %423 = vmatpush1.msra.mxu0 0.0
        %424 = vmatprep.subr.mxu0 0.0
        %425 = vmatpush1.msra.mxu0 0.0
        %426 = vmatprep.subr.mxu0 0.0
        %427 = vmatpush1.msra.mxu0 0.0
        %428 = vmatprep.subr.mxu0 0.0
        %429 = vmatpush1.msra.mxu0 0.0
        %430 = vmatprep.subr.mxu0 0.0
        %431 = vmatpush1.msra.mxu0 0.0
        %432 = vmatprep.subr.mxu0 0.0
        %433 = vmatpush1.msra.mxu0 0.0
        %434 = vmatprep.subr.mxu0 0.0
        %435 = vmatpush1.msra.mxu0 0.0
        %436 = vmatprep.subr.mxu0 0.0
        %437 = vmatpush1.msra.mxu0 0.0
        %438 = vmatprep.subr.mxu0 0.0
        %439 = vmatpush1.msra.mxu0 0.0
        %440 = vmatprep.subr.mxu0 0.0
        %441 = vmatpush1.msra.mxu0 0.0
        %442 = vmatprep.mubr.f32.mxu0 0.0
        %443 = vmatmul.mubr.f32.gmra.mrb[0].mxu0 %v376
        %v444 = vpop.f32.mrb[0].mxu0
        %v445 = vadd.f32 0.0, %v444
        %v446 = vpop.f32.mrb[0].mxu0
        %447 = vdwg.mxu0
        %v448 = vadd.f32 %v373, %v445
        %449 = vst.msk [vmem:[#allocation4] sm:$0xff] %vm265, %v448
        %450 = vst.msk [vmem:[#allocation2] sm:$0xff] %vm365, %v347
        // Predicated region
        $region37: #{attention_head.7} parent=31 // pred_check
          %p451 = pneg %p254
        $region38: #{attention_head.7} parent=31 // pred_check_branch
          %453 = sbr.rel (%p451) target = $region40
        $region39: #{attention_head.7} parent=31 // pred_region
          %v454 = vld [vmem:[#allocation3] sm:$0xff]
          %v455 = vrcp.pop %v454
          %v456 = vld [vmem:[#allocation4] sm:$0xff]
          %458 = vset.pattern.permute.xlu0 0
          %459 = vperm.xlu0 %458, %v455
          %v460 = vpop.permute.xlu0 %459
          %v462 = vmul.f32 %v456, %v460
          %463 = vst.msk [vmem:[%s232] sm:$0xff] %vm265, %v462
        $region40: #{attention_head.7} parent=31 // pred_fallthru
          _
        %s464 = sand.u32 %s130, 1
        %s465 = scalar_lea.sflag [#allocation6], %s464
        %s466 = sand.u32 %s130, 1
        %s467 = smul.addr %s466, 8
        %s468 = scalar_lea.vmem [#allocation5], %s467
        // Predicated region
        $region41: #{attention_head.7} parent=31 // pred_check
          %p469 = pneg %p140
        $region42: #{attention_head.7} parent=31 // pred_check_branch
          %471 = sbr.rel (%p469) target = $region44
        $region43: #{attention_head.7} parent=31 // pred_region
          %s473 = ssub.s32 128, 128
          %474 = vsyncadd %s465, %s473
          %s475 = sadd.s32 %s23, %s22
          %s476 = smul.addr %s475, 128
          %s477 = scalar_lea.hbm %s3, %s476
          %s479 = sshll.u32 %s468, 4
          %s480 = int_to_ptr.vmem [resolvable:$true] %s479
          %482 = dma.vmem_to_hbm [thread:$0]  %s480, 128, %s477, %s465
        $region44: #{attention_head.7} parent=31 // pred_fallthru
          _
      $region32: #{attention_head.7} parent=5 // pred_fallthru
        _
      %p483 = scmp.le.s32.totalorder 2, %s12
      // Predicated region
      $region45: #{attention_head.7} parent=5 // pred_check
        %p484 = pneg %p483
      $region46: #{attention_head.7} parent=5 // pred_check_branch
        %486 = sbr.rel (%p484) target = $region48
      $region47: #{attention_head.7} parent=5 // pred_region
        %s487 = ssub.s32 %s12, 2
        // Predicated region
        $region49: #{attention_head.7} parent=47 // pred_check
          %p488 = pneg %p146
        $region50: #{attention_head.7} parent=47 // pred_check_branch
          %490 = sbr.rel (%p488) target = $region52
        $region51: #{attention_head.7} parent=47 // pred_region
          %s491 = sand.u32 %s131, 1
          %s492 = scalar_lea.sflag [#allocation6], %s491
          %s493 = sand.u32 %s131, 1
          %s494 = smul.addr %s493, 8
          %s495 = scalar_lea.vmem [#allocation5], %s494
          %496 = dma.done %s492, 128
        $region52: #{attention_head.7} parent=47 // pred_fallthru
          _
      $region48: #{attention_head.7} parent=5 // pred_fallthru
        _
    $region6: #{attention_head.7} parent=1 // loop_footer
      %s16 = sadd.s32 1, %s12
    $region7: #{attention_head.7} parent=1 // loop_footer_branch
      %11 = sbr.rel target = $region3
    $region8: #{attention_head.7} parent=1 // loop_exit
      _
    %497 = vsyncpa [#allocation6], 1
    %s498 = scalar_lea.sflag [#allocation6], 1
    %499 = vsyncpa %s498, 1

</llo_original>
